<compile_context>
chip_gen: v6e
topology: v6e:2x2x1
jax: 0.10.0
libtpu: 0.0.40
codegen_flags: <defaults>
</compile_context>

<pallas_src>
import jax
import jax.numpy as jnp
from jax import lax
from jax.experimental import pallas as pl
from jax.experimental.pallas import tpu as pltpu

# ----------------------------- config -----------------------------
B = 2          # batch
S = 16         # sequence length
H = 128        # hidden size
V = 256        # vocab size
N_NEW = 8      # args.new_tokens
P = 2          # len(prompt_label_idx)
L = 8          # labels per prompt position
F = 256        # FFN intermediate size

# rows of the packed [8, H] f32 parameter slab
_MLP_B1, _MLP_B2, _BF2, _G1, _BE1, _G2, _BE2 = range(7)


def _layer_norm(x, g, b, eps=1e-12):
    mu = jnp.mean(x, axis=-1, keepdims=True)
    var = jnp.mean((x - mu) ** 2, axis=-1, keepdims=True)
    return (x - mu) * lax.rsqrt(var + eps) * g + b


# ============================================================================
# One fused kernel: embed-merge prologue -> encoder layer -> logits epilogue
# grid = (B,), "parallel"  (each TensorCore takes one example on v7x)
# ============================================================================
def fused_forward_kernel(prompt_pos_ref,      # SMEM [B, P] int32   (scalar prefetch)
                         raw_ref,             # [1, S, H]  f32      raw word embeddings
                         meta_ref,            # [1, S, 3]  f32      (flag, token_type, mask)
                         ext_ref,             # [N_NEW, H] bf16     extra-token table
                         mlp_w_ref,           # [2, H, H]  bf16     (mlp_w1, mlp_w2)
                         wqkv_ref,            # [H, 3H]    bf16     fused QKV
                         wo_ref,              # [H, H]     bf16
                         wf1_ref,             # [H, F]     bf16
                         wf2_ref,             # [F, H]     bf16
                         bf1_ref,             # [1, F]     f32
                         hvec_ref,            # [8, H]     f32      packed biases / LN params
                         pos_type_ref,        # [S+2, H]   f32      pos rows, then 2 type rows
                         label_t_ref,         # [H, P*L]   bf16     label embeddings (pre-T)
                         out_ref,             # [1, P, L]  f32
                         ntok_ref,            # scratch VMEM [N_NEW, H] f32
                         hid_ref):            # scratch VMEM [S, H]     f32
    b = pl.program_id(0)

    # ---------- prologue: new_token_embeddings = MLP(extra_token_embeddings) ----------
    h = jnp.dot(ext_ref[...], mlp_w_ref[0],
                preferred_element_type=jnp.float32) + hvec_ref[_MLP_B1:_MLP_B1 + 1, :]
    h = jnp.maximum(h, 0.0)
    new_tok = jnp.dot(h.astype(jnp.bfloat16), mlp_w_ref[1],
                      preferred_element_type=jnp.float32) + hvec_ref[_MLP_B2:_MLP_B2 + 1, :]
    ntok_ref[...] = new_tok                                         # [N_NEW, H]

    # ---------- flag-gated merge (VPU selects; flag==0 keeps the raw embedding) ----------
    raw = raw_ref[0]                                                # [S, H]
    meta = meta_ref[0]                                              # [S, 3]
    flags = meta[:, 0:1]                                            # [S, 1]
    merged = raw
    for n in range(1, N_NEW):                                       # static unroll
        merged = jnp.where(flags == float(n), ntok_ref[n:n + 1, :], merged)

    # ---------- positional + token-type embeddings ----------
    tt = meta[:, 1:2]                                               # [S, 1]
    x = (merged + pos_type_ref[0:S, :]
         + tt * pos_type_ref[S + 1:S + 2, :]
         + (1.0 - tt) * pos_type_ref[S:S + 1, :])                   # [S, H] f32

    # ---------- self-attention (fused QKV projection) ----------
    xb = x.astype(jnp.bfloat16)
    qkv = jnp.dot(xb, wqkv_ref[...], preferred_element_type=jnp.float32)   # [S, 3H]
    q = qkv[:, 0:H].astype(jnp.bfloat16)
    k = qkv[:, H:2 * H].astype(jnp.bfloat16)
    v = qkv[:, 2 * H:3 * H].astype(jnp.bfloat16)

    mask = meta[:, 2:3]                                             # [S, 1], 1 = keep
    scale = 1.0 / jnp.sqrt(jnp.float32(H))
    scores = lax.dot_general(q, k, (((1,), (1,)), ((), ())),
                             preferred_element_type=jnp.float32) * scale   # [S, S]
    scores = scores + (1.0 - mask.T) * (-1e9)                       # mask padded keys

    m = jnp.max(scores, axis=-1, keepdims=True)
    pexp = jnp.exp(scores - m)
    pexp = pexp * pl.reciprocal(jnp.sum(pexp, axis=-1, keepdims=True), approx=True)

    attn = jnp.dot(pexp.astype(jnp.bfloat16), v,
                   preferred_element_type=jnp.float32)              # [S, H]
    attn = jnp.dot(attn.astype(jnp.bfloat16), wo_ref[...],
                   preferred_element_type=jnp.float32)

    h1 = _layer_norm(x + attn, hvec_ref[_G1:_G1 + 1, :], hvec_ref[_BE1:_BE1 + 1, :])

    # ---------- FFN ----------
    ff = jnp.dot(h1.astype(jnp.bfloat16), wf1_ref[...],
                 preferred_element_type=jnp.float32) + bf1_ref[...]
    ff = jnp.maximum(ff, 0.0)
    ff = jnp.dot(ff.astype(jnp.bfloat16), wf2_ref[...],
                 preferred_element_type=jnp.float32) + hvec_ref[_BF2:_BF2 + 1, :]

    hidden = _layer_norm(h1 + ff, hvec_ref[_G2:_G2 + 1, :], hvec_ref[_BE2:_BE2 + 1, :])

    # ---------- epilogue: gather the P prompt rows + logits against label embeddings ----------
    hid_ref[...] = hidden
    rows = [hid_ref[pl.ds(prompt_pos_ref[b, p], 1), :] for p in range(P)]   # P x [1, H]
    hsel = jnp.concatenate(rows, axis=0).astype(jnp.bfloat16)               # [P, H]

    logits_full = jnp.dot(hsel, label_t_ref[...],
                          preferred_element_type=jnp.float32)               # [P, P*L]
    out = jnp.concatenate(
        [logits_full[p:p + 1, p * L:(p + 1) * L] for p in range(P)], axis=0)  # [P, L]
    out_ref[0] = out


def fused_forward(prompt_pos, raw, meta, label_t, params):
    batched = lambda shp: pl.BlockSpec(shp, lambda b, pp: (b,) + (0,) * (len(shp) - 1))
    shared = lambda shp: pl.BlockSpec(shp, lambda b, pp: (0,) * len(shp))
    return pl.pallas_call(
        fused_forward_kernel,
        out_shape=jax.ShapeDtypeStruct((B, P, L), jnp.float32),
        grid_spec=pltpu.PrefetchScalarGridSpec(
            num_scalar_prefetch=1,
            grid=(B,),
            in_specs=[batched((1, S, H)),        # raw embeddings
                      batched((1, S, 3)),        # per-token meta (flag, type, mask)
                      shared((N_NEW, H)),        # ext_emb
                      shared((2, H, H)),         # mlp_w (stacked)
                      shared((H, 3 * H)),        # wqkv
                      shared((H, H)),            # wo
                      shared((H, F)),            # wf1
                      shared((F, H)),            # wf2
                      shared((1, F)),            # bf1
                      shared((8, H)),            # packed H-vector params
                      shared((S + 2, H)),        # pos_emb + type_emb
                      shared((H, P * L))],       # label embeddings (pre-transposed)
            out_specs=batched((1, P, L)),
            scratch_shapes=[pltpu.VMEM((N_NEW, H), jnp.float32),
                            pltpu.VMEM((S, H), jnp.float32)]),
        compiler_params=pltpu.CompilerParams(dimension_semantics=("parallel",)),
    )(prompt_pos, raw, meta,
      params["ext_emb"], params["mlp_w"], params["wqkv"], params["wo"],
      params["wf1"], params["wf2"], params["bf1"], params["hvec"],
      params["pos_type"], label_t)


# ============================================================================
# Full forward: thin jitted glue around the single fused pallas_call
# ============================================================================
@jax.jit
def forward(params, input_ids, attention_mask, token_type_ids, input_flags,
            mlm_labels, labels, prompt_label_idx):
    del labels  # unused by the reference forward
    word_emb = params["word_emb"]                                   # [V, H] f32

    # raw_embeddings = word_embeddings(input_ids)   (data-dependent gather, XLA glue)
    raw = word_emb[input_ids]                                       # [B, S, H]

    # per-token metadata packed into one lane-dim-3 array
    meta = jnp.stack([input_flags.astype(jnp.float32),
                      token_type_ids.astype(jnp.float32),
                      attention_mask.astype(jnp.float32)], axis=-1)  # [B, S, 3]

    # static-shape replacement for nonzero(mlm_labels >= 0): the P prompt positions
    # per row, in row-major order (stable argsort of the "not a prompt" indicator).
    prompt_pos = jnp.argsort(jnp.where(mlm_labels >= 0, 0, 1),
                             axis=1)[:, :P].astype(jnp.int32)        # [B, P]

    # label-word embeddings, pre-transposed + bf16 for the epilogue matmul
    label_t = (word_emb[prompt_label_idx]
               .reshape(P * L, H).T.astype(jnp.bfloat16))            # [H, P*L]

    logits_bpl = fused_forward(prompt_pos, raw, meta, label_t, params)  # [B, P, L]
    return [logits_bpl[:, p, :] for p in range(P)]


# ============================================================================
# Deterministic parameter construction (packed / fused layouts)
# ============================================================================
def make_params(key):
    ks = jax.random.split(key, 12)
    nrm = lambda k, shp, s=0.02: (s * jax.random.normal(k, shp)).astype(jnp.float32)

    word_emb = nrm(ks[0], (V, H))
    ext_emb = nrm(ks[1], (N_NEW, H))
    mlp_w1, mlp_w2 = nrm(ks[2], (H, H)), nrm(ks[3], (H, H))
    pos_emb, type_emb = nrm(ks[4], (S, H)), nrm(ks[5], (2, H))
    wq, wk, wv, wo = (nrm(ks[6], (H, H)), nrm(ks[7], (H, H)),
                      nrm(ks[8], (H, H)), nrm(ks[9], (H, H)))
    wf1, wf2 = nrm(ks[10], (H, F)), nrm(ks[11], (F, H))

    zH = jnp.zeros((1, H), jnp.float32)
    oH = jnp.ones((1, H), jnp.float32)
    # rows: mlp_b1, mlp_b2, bf2, ln1_gamma, ln1_beta, ln2_gamma, ln2_beta, pad
    hvec = jnp.concatenate([zH, zH, zH, oH, zH, oH, zH, zH], axis=0)   # [8, H]

    return {
        "word_emb": word_emb,                                          # f32 [V, H]
        "ext_emb": ext_emb.astype(jnp.bfloat16),                       # bf16 [N_NEW, H]
        "mlp_w": jnp.stack([mlp_w1, mlp_w2], 0).astype(jnp.bfloat16),  # bf16 [2, H, H]
        "wqkv": jnp.concatenate([wq, wk, wv], 1).astype(jnp.bfloat16), # bf16 [H, 3H]
        "wo": wo.astype(jnp.bfloat16),                                 # bf16 [H, H]
        "wf1": wf1.astype(jnp.bfloat16),                               # bf16 [H, F]
        "wf2": wf2.astype(jnp.bfloat16),                               # bf16 [F, H]
        "bf1": jnp.zeros((1, F), jnp.float32),                         # f32  [1, F]
        "hvec": hvec,                                                  # f32  [8, H]
        "pos_type": jnp.concatenate([pos_emb, type_emb], axis=0),      # f32  [S+2, H]
    }


if __name__ == "__main__":
    key = jax.random.PRNGKey(0)
    kp, k1, k4 = jax.random.split(key, 3)

    params = make_params(kp)

    input_ids = jax.random.randint(k1, (B, S), 0, V, dtype=jnp.int32)
    attention_mask = jnp.ones((B, S), jnp.int32).at[1, S - 3:].set(0)
    token_type_ids = jnp.zeros((B, S), jnp.int32).at[:, S // 2:].set(1)
    # flag > 0 selects a row of the extra-token table (index = flag value, as in PyTorch)
    input_flags = jnp.zeros((B, S), jnp.int32).at[:, 1].set(3).at[:, 5].set(6)
    # exactly P prompt positions (>= 0) per example
    mlm_labels = jnp.full((B, S), -100, jnp.int32).at[:, 3].set(0).at[:, 7].set(1)
    labels = jnp.zeros((B,), jnp.int32)  # unused by forward (as in the PyTorch module)
    prompt_label_idx = jax.random.randint(k4, (P, L), 0, V, dtype=jnp.int32)

    logits = forward(params, input_ids, attention_mask, token_type_ids,
                     input_flags, mlm_labels, labels, prompt_label_idx)

    for l in logits:
        jax.block_until_ready(l)
    assert len(logits) == P and logits[0].shape == (B, L)
    print("KERNEL_OK")
</pallas_src>

<mosaic_0001>
module attributes {stable_mosaic.version = 11 : i64} {
  func.func @fused_forward_kernel(%arg0: i32, %arg1: memref<2x2xi32, #tpu.memory_space<smem>>, %arg2: memref<1x16x128xf32, #tpu.memory_space<vmem>>, %arg3: memref<1x16x3xf32, #tpu.memory_space<vmem>>, %arg4: memref<8x128xbf16, #tpu.memory_space<vmem>>, %arg5: memref<2x128x128xbf16, #tpu.memory_space<vmem>>, %arg6: memref<128x384xbf16, #tpu.memory_space<vmem>>, %arg7: memref<128x128xbf16, #tpu.memory_space<vmem>>, %arg8: memref<128x256xbf16, #tpu.memory_space<vmem>>, %arg9: memref<256x128xbf16, #tpu.memory_space<vmem>>, %arg10: memref<1x256xf32, #tpu.memory_space<vmem>>, %arg11: memref<8x128xf32, #tpu.memory_space<vmem>>, %arg12: memref<18x128xf32, #tpu.memory_space<vmem>>, %arg13: memref<128x16xbf16, #tpu.memory_space<vmem>>, %arg14: memref<1x2x8xf32, #tpu.memory_space<vmem>>, %arg15: memref<8x128xf32, #tpu.memory_space<vmem>>, %arg16: memref<16x128xf32, #tpu.memory_space<vmem>>) attributes {dimension_semantics = [#tpu.dimension_semantics<parallel>], iteration_bounds = array<i64: 2>, scalar_prefetch = 1 : i64, scratch_operands = 2 : i64, tpu.core_type = #tpu.core_type<tc>, window_params = [{transform_indices = @transform_0, window_bounds = array<i64: 1, 16, 128>}, {transform_indices = @transform_1, window_bounds = array<i64: 1, 16, 3>}, {pipeline_mode = #tpu.pipeline_mode<synchronous>, transform_indices = @transform_2, window_bounds = array<i64: 8, 128>}, {pipeline_mode = #tpu.pipeline_mode<synchronous>, transform_indices = @transform_3, window_bounds = array<i64: 2, 128, 128>}, {pipeline_mode = #tpu.pipeline_mode<synchronous>, transform_indices = @transform_4, window_bounds = array<i64: 128, 384>}, {pipeline_mode = #tpu.pipeline_mode<synchronous>, transform_indices = @transform_5, window_bounds = array<i64: 128, 128>}, {pipeline_mode = #tpu.pipeline_mode<synchronous>, transform_indices = @transform_6, window_bounds = array<i64: 128, 256>}, {pipeline_mode = #tpu.pipeline_mode<synchronous>, transform_indices = @transform_7, window_bounds = array<i64: 256, 128>}, {pipeline_mode = #tpu.pipeline_mode<synchronous>, transform_indices = @transform_8, window_bounds = array<i64: 1, 256>}, {pipeline_mode = #tpu.pipeline_mode<synchronous>, transform_indices = @transform_9, window_bounds = array<i64: 8, 128>}, {pipeline_mode = #tpu.pipeline_mode<synchronous>, transform_indices = @transform_10, window_bounds = array<i64: 18, 128>}, {pipeline_mode = #tpu.pipeline_mode<synchronous>, transform_indices = @transform_11, window_bounds = array<i64: 128, 16>}, {transform_indices = @transform_12, window_bounds = array<i64: 1, 2, 8>}]} {
    %c0 = arith.constant 0 : index
    %c0_0 = arith.constant 0 : index
    %0 = vector.load %arg4[%c0, %c0_0] : memref<8x128xbf16, #tpu.memory_space<vmem>>, vector<8x128xbf16>
    %c0_1 = arith.constant 0 : index
    %c0_2 = arith.constant 0 : index
    %c0_3 = arith.constant 0 : index
    %1 = vector.load %arg5[%c0_1, %c0_2, %c0_3] : memref<2x128x128xbf16, #tpu.memory_space<vmem>>, vector<1x128x128xbf16>
    %2 = vector.shape_cast %1 : vector<1x128x128xbf16> to vector<128x128xbf16>
    %cst = arith.constant dense<0.000000e+00> : vector<8x128xf32>
    %3 = tpu.matmul %0, %2, %cst {dimension_numbers = #tpu.dot_dimension_numbers<[1], [0], [0], [1], [0, 0, 1, 1], [], []>} : vector<8x128xbf16>, vector<128x128xbf16>, vector<8x128xf32> -> vector<8x128xf32>
    %c0_4 = arith.constant 0 : index
    %c0_5 = arith.constant 0 : index
    %4 = vector.load %arg11[%c0_4, %c0_5] : memref<8x128xf32, #tpu.memory_space<vmem>>, vector<1x128xf32>
    %5 = vector.broadcast %4 : vector<1x128xf32> to vector<8x128xf32>
    %6 = arith.addf %3, %5 : vector<8x128xf32>
    %cst_6 = arith.constant 0.000000e+00 : f32
    %7 = vector.broadcast %cst_6 : f32 to vector<8x128xf32>
    %8 = arith.maximumf %6, %7 : vector<8x128xf32>
    %9 = arith.truncf %8 : vector<8x128xf32> to vector<8x128xbf16>
    %c1 = arith.constant 1 : index
    %c0_7 = arith.constant 0 : index
    %c0_8 = arith.constant 0 : index
    %10 = vector.load %arg5[%c1, %c0_7, %c0_8] : memref<2x128x128xbf16, #tpu.memory_space<vmem>>, vector<1x128x128xbf16>
    %11 = vector.shape_cast %10 : vector<1x128x128xbf16> to vector<128x128xbf16>
    %cst_9 = arith.constant dense<0.000000e+00> : vector<8x128xf32>
    %12 = tpu.matmul %9, %11, %cst_9 {dimension_numbers = #tpu.dot_dimension_numbers<[1], [0], [0], [1], [0, 0, 1, 1], [], []>} : vector<8x128xbf16>, vector<128x128xbf16>, vector<8x128xf32> -> vector<8x128xf32>
    %c1_10 = arith.constant 1 : index
    %c0_11 = arith.constant 0 : index
    %13 = vector.load %arg11[%c1_10, %c0_11] : memref<8x128xf32, #tpu.memory_space<vmem>>, vector<1x128xf32>
    %14 = vector.broadcast %13 : vector<1x128xf32> to vector<8x128xf32>
    %15 = arith.addf %12, %14 : vector<8x128xf32>
    %c0_12 = arith.constant 0 : index
    %c0_13 = arith.constant 0 : index
    %16 = vector.load %arg15[%c0_12, %c0_13] : memref<8x128xf32, #tpu.memory_space<vmem>>, vector<8x128xf32>
    tpu.vector_store %arg15[%c0_12, %c0_13], %15 {strides = array<i32>} : memref<8x128xf32, #tpu.memory_space<vmem>>, vector<8x128xf32>,
    %c0_14 = arith.constant 0 : index
    %c0_15 = arith.constant 0 : index
    %c0_16 = arith.constant 0 : index
    %17 = vector.load %arg2[%c0_14, %c0_15, %c0_16] : memref<1x16x128xf32, #tpu.memory_space<vmem>>, vector<1x16x128xf32>
    %18 = vector.shape_cast %17 : vector<1x16x128xf32> to vector<16x128xf32>
    %c0_17 = arith.constant 0 : index
    %c0_18 = arith.constant 0 : index
    %c0_19 = arith.constant 0 : index
    %19 = vector.load %arg3[%c0_17, %c0_18, %c0_19] : memref<1x16x3xf32, #tpu.memory_space<vmem>>, vector<1x16x3xf32>
    %20 = vector.shape_cast %19 : vector<1x16x3xf32> to vector<16x3xf32>
    %21 = vector.extract_strided_slice %20 {offsets = [0, 0], sizes = [16, 1], strides = [1, 1]} : vector<16x3xf32> to vector<16x1xf32>
    %cst_20 = arith.constant 1.000000e+00 : f32
    %22 = vector.broadcast %cst_20 : f32 to vector<16x1xf32>
    %23 = arith.cmpf oeq, %21, %22 : vector<16x1xf32>
    %c1_21 = arith.constant 1 : index
    %c0_22 = arith.constant 0 : index
    %24 = vector.load %arg15[%c1_21, %c0_22] : memref<8x128xf32, #tpu.memory_space<vmem>>, vector<1x128xf32>
    %25 = vector.shape_cast %23 : vector<16x1xi1> to vector<16x1xi1>
    %26 = vector.broadcast %25 : vector<16x1xi1> to vector<16x128xi1>
    %27 = vector.shape_cast %24 : vector<1x128xf32> to vector<1x128xf32>
    %28 = vector.broadcast %27 : vector<1x128xf32> to vector<16x128xf32>
    %29 = arith.select %26, %28, %18 : vector<16x128xi1>, vector<16x128xf32>
    %cst_23 = arith.constant 2.000000e+00 : f32
    %30 = vector.broadcast %cst_23 : f32 to vector<16x1xf32>
    %31 = arith.cmpf oeq, %21, %30 : vector<16x1xf32>
    %c2 = arith.constant 2 : index
    %c0_24 = arith.constant 0 : index
    %32 = vector.load %arg15[%c2, %c0_24] : memref<8x128xf32, #tpu.memory_space<vmem>>, vector<1x128xf32>
    %33 = vector.shape_cast %31 : vector<16x1xi1> to vector<16x1xi1>
    %34 = vector.broadcast %33 : vector<16x1xi1> to vector<16x128xi1>
    %35 = vector.shape_cast %32 : vector<1x128xf32> to vector<1x128xf32>
    %36 = vector.broadcast %35 : vector<1x128xf32> to vector<16x128xf32>
    %37 = arith.select %34, %36, %29 : vector<16x128xi1>, vector<16x128xf32>
    %cst_25 = arith.constant 3.000000e+00 : f32
    %38 = vector.broadcast %cst_25 : f32 to vector<16x1xf32>
    %39 = arith.cmpf oeq, %21, %38 : vector<16x1xf32>
    %c3 = arith.constant 3 : index
    %c0_26 = arith.constant 0 : index
    %40 = vector.load %arg15[%c3, %c0_26] : memref<8x128xf32, #tpu.memory_space<vmem>>, vector<1x128xf32>
    %41 = vector.shape_cast %39 : vector<16x1xi1> to vector<16x1xi1>
    %42 = vector.broadcast %41 : vector<16x1xi1> to vector<16x128xi1>
    %43 = vector.shape_cast %40 : vector<1x128xf32> to vector<1x128xf32>
    %44 = vector.broadcast %43 : vector<1x128xf32> to vector<16x128xf32>
    %45 = arith.select %42, %44, %37 : vector<16x128xi1>, vector<16x128xf32>
    %cst_27 = arith.constant 4.000000e+00 : f32
    %46 = vector.broadcast %cst_27 : f32 to vector<16x1xf32>
    %47 = arith.cmpf oeq, %21, %46 : vector<16x1xf32>
    %c4 = arith.constant 4 : index
    %c0_28 = arith.constant 0 : index
    %48 = vector.load %arg15[%c4, %c0_28] : memref<8x128xf32, #tpu.memory_space<vmem>>, vector<1x128xf32>
    %49 = vector.shape_cast %47 : vector<16x1xi1> to vector<16x1xi1>
    %50 = vector.broadcast %49 : vector<16x1xi1> to vector<16x128xi1>
    %51 = vector.shape_cast %48 : vector<1x128xf32> to vector<1x128xf32>
    %52 = vector.broadcast %51 : vector<1x128xf32> to vector<16x128xf32>
    %53 = arith.select %50, %52, %45 : vector<16x128xi1>, vector<16x128xf32>
    %cst_29 = arith.constant 5.000000e+00 : f32
    %54 = vector.broadcast %cst_29 : f32 to vector<16x1xf32>
    %55 = arith.cmpf oeq, %21, %54 : vector<16x1xf32>
    %c5 = arith.constant 5 : index
    %c0_30 = arith.constant 0 : index
    %56 = vector.load %arg15[%c5, %c0_30] : memref<8x128xf32, #tpu.memory_space<vmem>>, vector<1x128xf32>
    %57 = vector.shape_cast %55 : vector<16x1xi1> to vector<16x1xi1>
    %58 = vector.broadcast %57 : vector<16x1xi1> to vector<16x128xi1>
    %59 = vector.shape_cast %56 : vector<1x128xf32> to vector<1x128xf32>
    %60 = vector.broadcast %59 : vector<1x128xf32> to vector<16x128xf32>
    %61 = arith.select %58, %60, %53 : vector<16x128xi1>, vector<16x128xf32>
    %cst_31 = arith.constant 6.000000e+00 : f32
    %62 = vector.broadcast %cst_31 : f32 to vector<16x1xf32>
    %63 = arith.cmpf oeq, %21, %62 : vector<16x1xf32>
    %c6 = arith.constant 6 : index
    %c0_32 = arith.constant 0 : index
    %64 = vector.load %arg15[%c6, %c0_32] : memref<8x128xf32, #tpu.memory_space<vmem>>, vector<1x128xf32>
    %65 = vector.shape_cast %63 : vector<16x1xi1> to vector<16x1xi1>
    %66 = vector.broadcast %65 : vector<16x1xi1> to vector<16x128xi1>
    %67 = vector.shape_cast %64 : vector<1x128xf32> to vector<1x128xf32>
    %68 = vector.broadcast %67 : vector<1x128xf32> to vector<16x128xf32>
    %69 = arith.select %66, %68, %61 : vector<16x128xi1>, vector<16x128xf32>
    %cst_33 = arith.constant 7.000000e+00 : f32
    %70 = vector.broadcast %cst_33 : f32 to vector<16x1xf32>
    %71 = arith.cmpf oeq, %21, %70 : vector<16x1xf32>
    %c7 = arith.constant 7 : index
    %c0_34 = arith.constant 0 : index
    %72 = vector.load %arg15[%c7, %c0_34] : memref<8x128xf32, #tpu.memory_space<vmem>>, vector<1x128xf32>
    %73 = vector.shape_cast %71 : vector<16x1xi1> to vector<16x1xi1>
    %74 = vector.broadcast %73 : vector<16x1xi1> to vector<16x128xi1>
    %75 = vector.shape_cast %72 : vector<1x128xf32> to vector<1x128xf32>
    %76 = vector.broadcast %75 : vector<1x128xf32> to vector<16x128xf32>
    %77 = arith.select %74, %76, %69 : vector<16x128xi1>, vector<16x128xf32>
    %78 = vector.extract_strided_slice %20 {offsets = [0, 1], sizes = [16, 1], strides = [1, 1]} : vector<16x3xf32> to vector<16x1xf32>
    %c0_35 = arith.constant 0 : index
    %c0_36 = arith.constant 0 : index
    %79 = vector.load %arg12[%c0_35, %c0_36] : memref<18x128xf32, #tpu.memory_space<vmem>>, vector<16x128xf32>
    %80 = arith.addf %77, %79 : vector<16x128xf32>
    %c17 = arith.constant 17 : index
    %c0_37 = arith.constant 0 : index
    %81 = vector.load %arg12[%c17, %c0_37] : memref<18x128xf32, #tpu.memory_space<vmem>>, vector<1x128xf32>
    %82 = vector.broadcast %78 : vector<16x1xf32> to vector<16x128xf32>
    %83 = vector.broadcast %81 : vector<1x128xf32> to vector<16x128xf32>
    %84 = arith.mulf %82, %83 : vector<16x128xf32>
    %85 = arith.addf %80, %84 : vector<16x128xf32>
    %cst_38 = arith.constant 1.000000e+00 : f32
    %86 = vector.broadcast %cst_38 : f32 to vector<16x1xf32>
    %87 = arith.subf %86, %78 : vector<16x1xf32>
    %c16 = arith.constant 16 : index
    %c0_39 = arith.constant 0 : index
    %88 = vector.load %arg12[%c16, %c0_39] : memref<18x128xf32, #tpu.memory_space<vmem>>, vector<1x128xf32>
    %89 = vector.broadcast %87 : vector<16x1xf32> to vector<16x128xf32>
    %90 = vector.broadcast %88 : vector<1x128xf32> to vector<16x128xf32>
    %91 = arith.mulf %89, %90 : vector<16x128xf32>
    %92 = arith.addf %85, %91 : vector<16x128xf32>
    %93 = arith.truncf %92 : vector<16x128xf32> to vector<16x128xbf16>
    %c0_40 = arith.constant 0 : index
    %c0_41 = arith.constant 0 : index
    %94 = vector.load %arg6[%c0_40, %c0_41] : memref<128x384xbf16, #tpu.memory_space<vmem>>, vector<128x384xbf16>
    %cst_42 = arith.constant dense<0.000000e+00> : vector<16x384xf32>
    %95 = tpu.matmul %93, %94, %cst_42 {dimension_numbers = #tpu.dot_dimension_numbers<[1], [0], [0], [1], [0, 0, 1, 1], [], []>} : vector<16x128xbf16>, vector<128x384xbf16>, vector<16x384xf32> -> vector<16x384xf32>
    %96 = vector.extract_strided_slice %95 {offsets = [0, 0], sizes = [16, 128], strides = [1, 1]} : vector<16x384xf32> to vector<16x128xf32>
    %97 = arith.truncf %96 : vector<16x128xf32> to vector<16x128xbf16>
    %98 = vector.extract_strided_slice %95 {offsets = [0, 128], sizes = [16, 128], strides = [1, 1]} : vector<16x384xf32> to vector<16x128xf32>
    %99 = arith.truncf %98 : vector<16x128xf32> to vector<16x128xbf16>
    %100 = vector.extract_strided_slice %95 {offsets = [0, 256], sizes = [16, 128], strides = [1, 1]} : vector<16x384xf32> to vector<16x128xf32>
    %101 = arith.truncf %100 : vector<16x128xf32> to vector<16x128xbf16>
    %102 = vector.extract_strided_slice %20 {offsets = [0, 2], sizes = [16, 1], strides = [1, 1]} : vector<16x3xf32> to vector<16x1xf32>
    %cst_43 = arith.constant 1.280000e+02 : f32
    %103 = math.sqrt %cst_43 : f32
    %cst_44 = arith.constant 1.000000e+00 : f32
    %104 = arith.divf %cst_44, %103 : f32
    %cst_45 = arith.constant dense<0.000000e+00> : vector<16x16xf32>
    %105 = tpu.matmul %97, %99, %cst_45 {dimension_numbers = #tpu.dot_dimension_numbers<[1], [1], [0], [0], [0, 0, 1, 0], [], []>} : vector<16x128xbf16>, vector<16x128xbf16>, vector<16x16xf32> -> vector<16x16xf32>
    %106 = vector.broadcast %104 : f32 to vector<16x16xf32>
    %107 = arith.mulf %105, %106 : vector<16x16xf32>
    %108 = tpu.transpose %102, [1, 0] : vector<16x1xf32> -> vector<1x16xf32>
    %cst_46 = arith.constant 1.000000e+00 : f32
    %109 = vector.broadcast %cst_46 : f32 to vector<1x16xf32>
    %110 = arith.subf %109, %108 : vector<1x16xf32>
    %cst_47 = arith.constant -1.000000e+09 : f32
    %111 = vector.broadcast %cst_47 : f32 to vector<1x16xf32>
    %112 = arith.mulf %110, %111 : vector<1x16xf32>
    %113 = vector.broadcast %112 : vector<1x16xf32> to vector<16x16xf32>
    %114 = arith.addf %107, %113 : vector<16x16xf32>
    %cst_48 = arith.constant dense<0xFF800000> : vector<16xf32>
    %115 = vector.multi_reduction <maximumf>, %114, %cst_48 [1] : vector<16x16xf32> to vector<16xf32>
    %116 = vector.shape_cast %115 : vector<16xf32> to vector<16x1xf32>
    %117 = vector.broadcast %116 : vector<16x1xf32> to vector<16x16xf32>
    %118 = arith.subf %114, %117 : vector<16x16xf32>
    %119 = math.exp %118 : vector<16x16xf32>
    %cst_49 = arith.constant dense<0.000000e+00> : vector<16xf32>
    %120 = vector.multi_reduction <add>, %119, %cst_49 [1] : vector<16x16xf32> to vector<16xf32>
    %121 = vector.shape_cast %120 : vector<16xf32> to vector<16x1xf32>
    %122 = tpu.reciprocal %121 {approx = true} : vector<16x1xf32> -> vector<16x1xf32>
    %123 = vector.broadcast %122 : vector<16x1xf32> to vector<16x16xf32>
    %124 = arith.mulf %119, %123 : vector<16x16xf32>
    %125 = arith.truncf %124 : vector<16x16xf32> to vector<16x16xbf16>
    %cst_50 = arith.constant dense<0.000000e+00> : vector<16x128xf32>
    %126 = tpu.matmul %125, %101, %cst_50 {dimension_numbers = #tpu.dot_dimension_numbers<[1], [0], [0], [1], [0, 0, 1, 1], [], []>} : vector<16x16xbf16>, vector<16x128xbf16>, vector<16x128xf32> -> vector<16x128xf32>
    %127 = arith.truncf %126 : vector<16x128xf32> to vector<16x128xbf16>
    %c0_51 = arith.constant 0 : index
    %c0_52 = arith.constant 0 : index
    %128 = vector.load %arg7[%c0_51, %c0_52] : memref<128x128xbf16, #tpu.memory_space<vmem>>, vector<128x128xbf16>
    %cst_53 = arith.constant dense<0.000000e+00> : vector<16x128xf32>
    %129 = tpu.matmul %127, %128, %cst_53 {dimension_numbers = #tpu.dot_dimension_numbers<[1], [0], [0], [1], [0, 0, 1, 1], [], []>} : vector<16x128xbf16>, vector<128x128xbf16>, vector<16x128xf32> -> vector<16x128xf32>
    %130 = arith.addf %92, %129 : vector<16x128xf32>
    %c3_54 = arith.constant 3 : index
    %c0_55 = arith.constant 0 : index
    %131 = vector.load %arg11[%c3_54, %c0_55] : memref<8x128xf32, #tpu.memory_space<vmem>>, vector<1x128xf32>
    %c4_56 = arith.constant 4 : index
    %c0_57 = arith.constant 0 : index
    %132 = vector.load %arg11[%c4_56, %c0_57] : memref<8x128xf32, #tpu.memory_space<vmem>>, vector<1x128xf32>
    %cst_58 = arith.constant dense<0.000000e+00> : vector<16xf32>
    %133 = vector.multi_reduction <add>, %130, %cst_58 [1] : vector<16x128xf32> to vector<16xf32>
    %134 = vector.shape_cast %133 : vector<16xf32> to vector<16x1xf32>
    %cst_59 = arith.constant 1.280000e+02 : f32
    %135 = vector.broadcast %cst_59 : f32 to vector<16x1xf32>
    %136 = arith.divf %134, %135 : vector<16x1xf32>
    %137 = vector.broadcast %136 : vector<16x1xf32> to vector<16x128xf32>
    %138 = arith.subf %130, %137 : vector<16x128xf32>
    %139 = arith.mulf %138, %138 : vector<16x128xf32>
    %cst_60 = arith.constant dense<0.000000e+00> : vector<16xf32>
    %140 = vector.multi_reduction <add>, %139, %cst_60 [1] : vector<16x128xf32> to vector<16xf32>
    %141 = vector.shape_cast %140 : vector<16xf32> to vector<16x1xf32>
    %cst_61 = arith.constant 1.280000e+02 : f32
    %142 = vector.broadcast %cst_61 : f32 to vector<16x1xf32>
    %143 = arith.divf %141, %142 : vector<16x1xf32>
    %144 = vector.broadcast %136 : vector<16x1xf32> to vector<16x128xf32>
    %145 = arith.subf %130, %144 : vector<16x128xf32>
    %cst_62 = arith.constant 9.99999996E-13 : f32
    %146 = vector.broadcast %cst_62 : f32 to vector<16x1xf32>
    %147 = arith.addf %143, %146 : vector<16x1xf32>
    %148 = math.rsqrt %147 : vector<16x1xf32>
    %149 = vector.broadcast %148 : vector<16x1xf32> to vector<16x128xf32>
    %150 = arith.mulf %145, %149 : vector<16x128xf32>
    %151 = vector.broadcast %131 : vector<1x128xf32> to vector<16x128xf32>
    %152 = arith.mulf %150, %151 : vector<16x128xf32>
    %153 = vector.broadcast %132 : vector<1x128xf32> to vector<16x128xf32>
    %154 = arith.addf %152, %153 : vector<16x128xf32>
    %155 = arith.truncf %154 : vector<16x128xf32> to vector<16x128xbf16>
    %c0_63 = arith.constant 0 : index
    %c0_64 = arith.constant 0 : index
    %156 = vector.load %arg8[%c0_63, %c0_64] : memref<128x256xbf16, #tpu.memory_space<vmem>>, vector<128x256xbf16>
    %cst_65 = arith.constant dense<0.000000e+00> : vector<16x256xf32>
    %157 = tpu.matmul %155, %156, %cst_65 {dimension_numbers = #tpu.dot_dimension_numbers<[1], [0], [0], [1], [0, 0, 1, 1], [], []>} : vector<16x128xbf16>, vector<128x256xbf16>, vector<16x256xf32> -> vector<16x256xf32>
    %c0_66 = arith.constant 0 : index
    %c0_67 = arith.constant 0 : index
    %158 = vector.load %arg10[%c0_66, %c0_67] : memref<1x256xf32, #tpu.memory_space<vmem>>, vector<1x256xf32>
    %159 = vector.broadcast %158 : vector<1x256xf32> to vector<16x256xf32>
    %160 = arith.addf %157, %159 : vector<16x256xf32>
    %cst_68 = arith.constant 0.000000e+00 : f32
    %161 = vector.broadcast %cst_68 : f32 to vector<16x256xf32>
    %162 = arith.maximumf %160, %161 : vector<16x256xf32>
    %163 = arith.truncf %162 : vector<16x256xf32> to vector<16x256xbf16>
    %c0_69 = arith.constant 0 : index
    %c0_70 = arith.constant 0 : index
    %164 = vector.load %arg9[%c0_69, %c0_70] : memref<256x128xbf16, #tpu.memory_space<vmem>>, vector<256x128xbf16>
    %cst_71 = arith.constant dense<0.000000e+00> : vector<16x128xf32>
    %165 = tpu.matmul %163, %164, %cst_71 {dimension_numbers = #tpu.dot_dimension_numbers<[1], [0], [0], [1], [0, 0, 1, 1], [], []>} : vector<16x256xbf16>, vector<256x128xbf16>, vector<16x128xf32> -> vector<16x128xf32>
    %c2_72 = arith.constant 2 : index
    %c0_73 = arith.constant 0 : index
    %166 = vector.load %arg11[%c2_72, %c0_73] : memref<8x128xf32, #tpu.memory_space<vmem>>, vector<1x128xf32>
    %167 = vector.broadcast %166 : vector<1x128xf32> to vector<16x128xf32>
    %168 = arith.addf %165, %167 : vector<16x128xf32>
    %169 = arith.addf %154, %168 : vector<16x128xf32>
    %c5_74 = arith.constant 5 : index
    %c0_75 = arith.constant 0 : index
    %170 = vector.load %arg11[%c5_74, %c0_75] : memref<8x128xf32, #tpu.memory_space<vmem>>, vector<1x128xf32>
    %c6_76 = arith.constant 6 : index
    %c0_77 = arith.constant 0 : index
    %171 = vector.load %arg11[%c6_76, %c0_77] : memref<8x128xf32, #tpu.memory_space<vmem>>, vector<1x128xf32>
    %cst_78 = arith.constant dense<0.000000e+00> : vector<16xf32>
    %172 = vector.multi_reduction <add>, %169, %cst_78 [1] : vector<16x128xf32> to vector<16xf32>
    %173 = vector.shape_cast %172 : vector<16xf32> to vector<16x1xf32>
    %cst_79 = arith.constant 1.280000e+02 : f32
    %174 = vector.broadcast %cst_79 : f32 to vector<16x1xf32>
    %175 = arith.divf %173, %174 : vector<16x1xf32>
    %176 = vector.broadcast %175 : vector<16x1xf32> to vector<16x128xf32>
    %177 = arith.subf %169, %176 : vector<16x128xf32>
    %178 = arith.mulf %177, %177 : vector<16x128xf32>
    %cst_80 = arith.constant dense<0.000000e+00> : vector<16xf32>
    %179 = vector.multi_reduction <add>, %178, %cst_80 [1] : vector<16x128xf32> to vector<16xf32>
    %180 = vector.shape_cast %179 : vector<16xf32> to vector<16x1xf32>
    %cst_81 = arith.constant 1.280000e+02 : f32
    %181 = vector.broadcast %cst_81 : f32 to vector<16x1xf32>
    %182 = arith.divf %180, %181 : vector<16x1xf32>
    %183 = vector.broadcast %175 : vector<16x1xf32> to vector<16x128xf32>
    %184 = arith.subf %169, %183 : vector<16x128xf32>
    %cst_82 = arith.constant 9.99999996E-13 : f32
    %185 = vector.broadcast %cst_82 : f32 to vector<16x1xf32>
    %186 = arith.addf %182, %185 : vector<16x1xf32>
    %187 = math.rsqrt %186 : vector<16x1xf32>
    %188 = vector.broadcast %187 : vector<16x1xf32> to vector<16x128xf32>
    %189 = arith.mulf %184, %188 : vector<16x128xf32>
    %190 = vector.broadcast %170 : vector<1x128xf32> to vector<16x128xf32>
    %191 = arith.mulf %189, %190 : vector<16x128xf32>
    %192 = vector.broadcast %171 : vector<1x128xf32> to vector<16x128xf32>
    %193 = arith.addf %191, %192 : vector<16x128xf32>
    %c0_83 = arith.constant 0 : index
    %c0_84 = arith.constant 0 : index
    %194 = vector.load %arg16[%c0_83, %c0_84] : memref<16x128xf32, #tpu.memory_space<vmem>>, vector<16x128xf32>
    tpu.vector_store %arg16[%c0_83, %c0_84], %193 {strides = array<i32>} : memref<16x128xf32, #tpu.memory_space<vmem>>, vector<16x128xf32>,
    %195 = arith.index_cast %arg0 : i32 to index
    %c0_85 = arith.constant 0 : index
    %196 = memref.load %arg1[%195, %c0_85] : memref<2x2xi32, #tpu.memory_space<smem>>
    %197 = arith.index_cast %196 : i32 to index
    %c0_86 = arith.constant 0 : index
    %198 = vector.load %arg16[%197, %c0_86] : memref<16x128xf32, #tpu.memory_space<vmem>>, vector<1x128xf32>
    %199 = arith.index_cast %arg0 : i32 to index
    %c1_87 = arith.constant 1 : index
    %200 = memref.load %arg1[%199, %c1_87] : memref<2x2xi32, #tpu.memory_space<smem>>
    %201 = arith.index_cast %200 : i32 to index
    %c0_88 = arith.constant 0 : index
    %202 = vector.load %arg16[%201, %c0_88] : memref<16x128xf32, #tpu.memory_space<vmem>>, vector<1x128xf32>
    %203 = tpu.concatenate %198, %202 in 0 : vector<1x128xf32>, vector<1x128xf32> -> vector<2x128xf32>
    %204 = arith.truncf %203 : vector<2x128xf32> to vector<2x128xbf16>
    %c0_89 = arith.constant 0 : index
    %c0_90 = arith.constant 0 : index
    %205 = vector.load %arg13[%c0_89, %c0_90] : memref<128x16xbf16, #tpu.memory_space<vmem>>, vector<128x16xbf16>
    %cst_91 = arith.constant dense<0.000000e+00> : vector<2x16xf32>
    %206 = tpu.matmul %204, %205, %cst_91 {dimension_numbers = #tpu.dot_dimension_numbers<[1], [0], [0], [1], [0, 0, 1, 1], [], []>} : vector<2x128xbf16>, vector<128x16xbf16>, vector<2x16xf32> -> vector<2x16xf32>
    %207 = vector.extract_strided_slice %206 {offsets = [0, 0], sizes = [1, 8], strides = [1, 1]} : vector<2x16xf32> to vector<1x8xf32>
    %208 = vector.extract_strided_slice %206 {offsets = [1, 8], sizes = [1, 8], strides = [1, 1]} : vector<2x16xf32> to vector<1x8xf32>
    %209 = tpu.concatenate %207, %208 in 0 : vector<1x8xf32>, vector<1x8xf32> -> vector<2x8xf32>
    %c0_92 = arith.constant 0 : index
    %c0_93 = arith.constant 0 : index
    %c0_94 = arith.constant 0 : index
    %210 = vector.load %arg14[%c0_92, %c0_93, %c0_94] : memref<1x2x8xf32, #tpu.memory_space<vmem>>, vector<1x2x8xf32>
    %211 = vector.shape_cast %210 : vector<1x2x8xf32> to vector<2x8xf32>
    %212 = vector.shape_cast %209 : vector<2x8xf32> to vector<1x2x8xf32>
    tpu.vector_store %arg14[%c0_92, %c0_93, %c0_94], %212 {strides = array<i32>} : memref<1x2x8xf32, #tpu.memory_space<vmem>>, vector<1x2x8xf32>,
    return
  }
  func.func @transform_0(%arg0: i32, %arg1: memref<2x2xi32, #tpu.memory_space<smem>>) -> (i32, i32, i32) {
    %c0_i32 = arith.constant 0 : i32
    %c0_i32_0 = arith.constant 0 : i32
    %c0_i32_1 = arith.constant 0 : i32
    return %arg0, %c0_i32, %c0_i32_0 : i32, i32, i32
  }
  func.func @transform_1(%arg0: i32, %arg1: memref<2x2xi32, #tpu.memory_space<smem>>) -> (i32, i32, i32) {
    %c0_i32 = arith.constant 0 : i32
    %c0_i32_0 = arith.constant 0 : i32
    %c0_i32_1 = arith.constant 0 : i32
    return %arg0, %c0_i32, %c0_i32_0 : i32, i32, i32
  }
  func.func @transform_2(%arg0: i32, %arg1: memref<2x2xi32, #tpu.memory_space<smem>>) -> (i32, i32) {
    %c0_i32 = arith.constant 0 : i32
    %c0_i32_0 = arith.constant 0 : i32
    %c0_i32_1 = arith.constant 0 : i32
    return %c0_i32, %c0_i32_0 : i32, i32
  }
  func.func @transform_3(%arg0: i32, %arg1: memref<2x2xi32, #tpu.memory_space<smem>>) -> (i32, i32, i32) {
    %c0_i32 = arith.constant 0 : i32
    %c0_i32_0 = arith.constant 0 : i32
    %c0_i32_1 = arith.constant 0 : i32
    %c0_i32_2 = arith.constant 0 : i32
    return %c0_i32, %c0_i32_0, %c0_i32_1 : i32, i32, i32
  }
  func.func @transform_4(%arg0: i32, %arg1: memref<2x2xi32, #tpu.memory_space<smem>>) -> (i32, i32) {
    %c0_i32 = arith.constant 0 : i32
    %c0_i32_0 = arith.constant 0 : i32
    %c0_i32_1 = arith.constant 0 : i32
    return %c0_i32, %c0_i32_0 : i32, i32
  }
  func.func @transform_5(%arg0: i32, %arg1: memref<2x2xi32, #tpu.memory_space<smem>>) -> (i32, i32) {
    %c0_i32 = arith.constant 0 : i32
    %c0_i32_0 = arith.constant 0 : i32
    %c0_i32_1 = arith.constant 0 : i32
    return %c0_i32, %c0_i32_0 : i32, i32
  }
  func.func @transform_6(%arg0: i32, %arg1: memref<2x2xi32, #tpu.memory_space<smem>>) -> (i32, i32) {
    %c0_i32 = arith.constant 0 : i32
    %c0_i32_0 = arith.constant 0 : i32
    %c0_i32_1 = arith.constant 0 : i32
    return %c0_i32, %c0_i32_0 : i32, i32
  }
  func.func @transform_7(%arg0: i32, %arg1: memref<2x2xi32, #tpu.memory_space<smem>>) -> (i32, i32) {
    %c0_i32 = arith.constant 0 : i32
    %c0_i32_0 = arith.constant 0 : i32
    %c0_i32_1 = arith.constant 0 : i32
    return %c0_i32, %c0_i32_0 : i32, i32
  }
  func.func @transform_8(%arg0: i32, %arg1: memref<2x2xi32, #tpu.memory_space<smem>>) -> (i32, i32) {
    %c0_i32 = arith.constant 0 : i32
    %c0_i32_0 = arith.constant 0 : i32
    %c0_i32_1 = arith.constant 0 : i32
    return %c0_i32, %c0_i32_0 : i32, i32
  }
  func.func @transform_9(%arg0: i32, %arg1: memref<2x2xi32, #tpu.memory_space<smem>>) -> (i32, i32) {
    %c0_i32 = arith.constant 0 : i32
    %c0_i32_0 = arith.constant 0 : i32
    %c0_i32_1 = arith.constant 0 : i32
    return %c0_i32, %c0_i32_0 : i32, i32
  }
  func.func @transform_10(%arg0: i32, %arg1: memref<2x2xi32, #tpu.memory_space<smem>>) -> (i32, i32) {
    %c0_i32 = arith.constant 0 : i32
    %c0_i32_0 = arith.constant 0 : i32
    %c0_i32_1 = arith.constant 0 : i32
    return %c0_i32, %c0_i32_0 : i32, i32
  }
  func.func @transform_11(%arg0: i32, %arg1: memref<2x2xi32, #tpu.memory_space<smem>>) -> (i32, i32) {
    %c0_i32 = arith.constant 0 : i32
    %c0_i32_0 = arith.constant 0 : i32
    %c0_i32_1 = arith.constant 0 : i32
    return %c0_i32, %c0_i32_0 : i32, i32
  }
  func.func @transform_12(%arg0: i32, %arg1: memref<2x2xi32, #tpu.memory_space<smem>>) -> (i32, i32, i32) {
    %c0_i32 = arith.constant 0 : i32
    %c0_i32_0 = arith.constant 0 : i32
    %c0_i32_1 = arith.constant 0 : i32
    return %arg0, %c0_i32, %c0_i32_0 : i32, i32, i32
  }
}

</mosaic_0001>

<llo_original>
// kernel: forward.1
$region0: #{forward.1}
  #allocation0 [shape = 'u32[]', space=smem, size = 0x4, offset = 0x4, fixed_abs, tag = 'smem constant byte address 0x4 - core index']
  #allocation1 [shape = 'u32[144,128]{1,0:T(1,128)}', space=vmem, size = 0x12000, scoped, tag = 'internal scratch']
  #allocation2 [shape = 'f32[8,128]{1,0:T(8,128)}', space=vmem, size = 0x1000, scoped, tag = 'scratch operand']
  #allocation3 [shape = 'f32[16,128]{1,0:T(8,128)}', space=vmem, size = 0x2000, scoped, tag = 'scratch operand']
  #allocation4 [shape = 's32[1]{0}', space=sflag, size = 0x4, scoped, tag = 'scoped memory for forward.1']
  #allocation5 [shape = 'u8[1024]{0}', space=smem, size = 0x400, scoped, tag = 'prefetched SMEM operand 0']
  %s0 = inlined_call_operand.vmem [shape: s32[2,2], index: 0, kind: input, shape index: {}]
  %s1 = inlined_call_operand.vmem [shape: f32[2,16,128], index: 1, kind: input, shape index: {}]
  %s2 = inlined_call_operand.vmem [shape: f32[2,16,3], index: 2, kind: input, shape index: {}]
  %s3 = inlined_call_operand.vmem [shape: bf16[8,128], index: 3, kind: input, shape index: {}]
  %s4 = inlined_call_operand.vmem [shape: bf16[2,128,128], index: 4, kind: input, shape index: {}]
  %s5 = inlined_call_operand.vmem [shape: bf16[128,384], index: 5, kind: input, shape index: {}]
  %s6 = inlined_call_operand.hbm [shape: bf16[128,128], index: 6, kind: input, shape index: {}]
  %s7 = inlined_call_operand.vmem [shape: bf16[128,256], index: 7, kind: input, shape index: {}]
  %s8 = inlined_call_operand.vmem [shape: bf16[256,128], index: 8, kind: input, shape index: {}]
  %s9 = inlined_call_operand.vmem [shape: f32[1,256], index: 9, kind: input, shape index: {}]
  %s10 = inlined_call_operand.vmem [shape: f32[8,128], index: 10, kind: input, shape index: {}]
  %s11 = inlined_call_operand.vmem [shape: f32[18,128], index: 11, kind: input, shape index: {}]
  %s12 = inlined_call_operand.vmem [shape: bf16[128,16], index: 12, kind: input, shape index: {}]
  %s13 = inlined_call_operand.vmem [shape: f32[2,2,8], index: 13, kind: output, shape index: {}]
  %s14 = sld [smem:[#allocation0]]
  $region85: #{forward.1} parent=0
    _
  %s16 = ssub.s32 1, %s14
  %s17 = scalar_select 0, %s16, %s14
  %s18 = sshll.u32 %s0, 4
  %s19 = int_to_ptr.vmem [resolvable:$true] %s18
  %21 = dma.vmem_to_smem %s19, 32, [#allocation5], [#allocation4]
  %22 = dma.done [#allocation4], 32
  %23 = sfence
  $region1: #{forward.1} parent=0
    #allocation6 [shape = 'u8[32768]{0}', space=vmem, size = 0x8000, scoped, tag = 'input window, operand 6, single buffered']
    #allocation7 [shape = 's32[2]{0}', space=sflag, size = 0x8, scoped, tag = 'scoped memory for forward.1']
    %24 = vsyncpa [#allocation7], 0
    loop: start=0, step=1, limit=4
    $region2: #{forward.1} parent=1 // loop_pre_header
      _
    $region3: #{forward.1} parent=1 // loop_header
      %s26 = sphi 0, %s30
      %p27 = scmp.ge.s32.totalorder %s26, 4
      %s36 = sphi 0, %s38
      %s39 = sphi 0, %s36
      %s40 = sphi 0, %s39
      %s56 = sphi 0, %s40
      %s62 = sphi 0, %s64
      %s65 = sphi 0, %s62
      %s66 = sphi 0, %s65
      %s82 = sphi 0, %s66
      %s86 = sphi 0, %s86
      %s88 = sphi 0, %s86
      %s89 = sphi 0, %s88
      %s103 = sphi 0, %s89
      %s107 = sphi 0, %s107
      %s109 = sphi 0, %s107
      %s110 = sphi 0, %s109
      %s124 = sphi 0, %s110
      %s128 = sphi 0, %s128
      %s130 = sphi 0, %s128
      %s131 = sphi 0, %s130
      %s145 = sphi 0, %s131
      %s149 = sphi 0, %s149
      %s151 = sphi 0, %s149
      %s152 = sphi 0, %s151
      %s166 = sphi 0, %s152
      %s170 = sphi 0, %s170
      %s172 = sphi 0, %s170
      %s173 = sphi 0, %s172
      %s187 = sphi 0, %s173
      %s191 = sphi 0, %s191
      %s193 = sphi 0, %s191
      %s194 = sphi 0, %s193
      %s208 = sphi 0, %s194
      %s212 = sphi 0, %s212
      %s214 = sphi 0, %s212
      %s215 = sphi 0, %s214
      %s229 = sphi 0, %s215
      %s233 = sphi 0, %s233
      %s235 = sphi 0, %s233
      %s236 = sphi 0, %s235
      %s250 = sphi 0, %s236
      %s254 = sphi 0, %s254
      %s256 = sphi 0, %s254
      %s257 = sphi 0, %s256
      %s271 = sphi 0, %s257
      %s275 = sphi 0, %s275
      %s277 = sphi 0, %s275
      %s278 = sphi 0, %s277
      %s292 = sphi 0, %s278
      %s298 = sphi 0, %s300
      %s301 = sphi 0, %s298
      %s302 = sphi 0, %s301
      %s318 = sphi 0, %s302
    $region4: #{forward.1} parent=1 // loop_header_branch
      %29 = sbr.rel (%p27) target = $region8
    $region5: #{forward.1} parent=1 // loop_body
      %s31 = ssub.s32 %s26, 1
      %s32 = ssub.s32 %s26, 2
      %s33 = sadd.s32 %s26, 1
      %s34 = ssub.s32 %s26, %s33
      %p35 = scmp.eq.s32.totalorder %s34, 0
      %s37 = sadd.s32 %s36, 1
      %s38 = scalar_select %p35, %s36, %s37
      %p41 = pneg %p35
      %p42 = scmp.eq.s32.totalorder %s26, 1
      %p43 = por %p41, %p42
      %p44 = scmp.ne.s32.totalorder %s36, %s39
      %p45 = scmp.eq.s32.totalorder %s26, 0
      %p46 = por %p44, %p45
      %p47 = scmp.ne.s32.totalorder %s36, %s39
      %p48 = scmp.eq.s32.totalorder %s31, 1
      %p49 = por %p47, %p48
      %p50 = scmp.ne.s32.totalorder %s39, %s40
      %p51 = scmp.eq.s32.totalorder %s31, 0
      %p52 = por %p50, %p51
      %p53 = scmp.ne.s32.totalorder %s39, %s40
      %p54 = scmp.eq.s32.totalorder %s32, 1
      %p55 = por %p53, %p54
      %p57 = scmp.ne.s32.totalorder %s40, %s56
      %p58 = scmp.eq.s32.totalorder %s32, 0
      %p59 = por %p57, %p58
      %s60 = ssub.s32 %s26, %s33
      %p61 = scmp.eq.s32.totalorder %s60, 0
      %s63 = sadd.s32 %s62, 1
      %s64 = scalar_select %p61, %s62, %s63
      %p67 = pneg %p61
      %p68 = scmp.eq.s32.totalorder %s26, 1
      %p69 = por %p67, %p68
      %p70 = scmp.ne.s32.totalorder %s62, %s65
      %p71 = scmp.eq.s32.totalorder %s26, 0
      %p72 = por %p70, %p71
      %p73 = scmp.ne.s32.totalorder %s62, %s65
      %p74 = scmp.eq.s32.totalorder %s31, 1
      %p75 = por %p73, %p74
      %p76 = scmp.ne.s32.totalorder %s65, %s66
      %p77 = scmp.eq.s32.totalorder %s31, 0
      %p78 = por %p76, %p77
      %p79 = scmp.ne.s32.totalorder %s65, %s66
      %p80 = scmp.eq.s32.totalorder %s32, 1
      %p81 = por %p79, %p80
      %p83 = scmp.ne.s32.totalorder %s66, %s82
      %p84 = scmp.eq.s32.totalorder %s32, 0
      %p85 = por %p83, %p84
      %s87 = sadd.s32 %s86, 1
      %p90 = scmp.eq.s32.totalorder %s26, 1
      %p91 = scmp.ne.s32.totalorder %s86, %s88
      %p92 = scmp.eq.s32.totalorder %s26, 0
      %p93 = por %p91, %p92
      %p94 = scmp.ne.s32.totalorder %s86, %s88
      %p95 = scmp.eq.s32.totalorder %s31, 1
      %p96 = por %p94, %p95
      %p97 = scmp.ne.s32.totalorder %s88, %s89
      %p98 = scmp.eq.s32.totalorder %s31, 0
      %p99 = por %p97, %p98
      %p100 = scmp.ne.s32.totalorder %s88, %s89
      %p101 = scmp.eq.s32.totalorder %s32, 1
      %p102 = por %p100, %p101
      %p104 = scmp.ne.s32.totalorder %s89, %s103
      %p105 = scmp.eq.s32.totalorder %s32, 0
      %p106 = por %p104, %p105
      %s108 = sadd.s32 %s107, 1
      %p111 = scmp.eq.s32.totalorder %s26, 1
      %p112 = scmp.ne.s32.totalorder %s107, %s109
      %p113 = scmp.eq.s32.totalorder %s26, 0
      %p114 = por %p112, %p113
      %p115 = scmp.ne.s32.totalorder %s107, %s109
      %p116 = scmp.eq.s32.totalorder %s31, 1
      %p117 = por %p115, %p116
      %p118 = scmp.ne.s32.totalorder %s109, %s110
      %p119 = scmp.eq.s32.totalorder %s31, 0
      %p120 = por %p118, %p119
      %p121 = scmp.ne.s32.totalorder %s109, %s110
      %p122 = scmp.eq.s32.totalorder %s32, 1
      %p123 = por %p121, %p122
      %p125 = scmp.ne.s32.totalorder %s110, %s124
      %p126 = scmp.eq.s32.totalorder %s32, 0
      %p127 = por %p125, %p126
      %s129 = sadd.s32 %s128, 1
      %p132 = scmp.eq.s32.totalorder %s26, 1
      %p133 = scmp.ne.s32.totalorder %s128, %s130
      %p134 = scmp.eq.s32.totalorder %s26, 0
      %p135 = por %p133, %p134
      %p136 = scmp.ne.s32.totalorder %s128, %s130
      %p137 = scmp.eq.s32.totalorder %s31, 1
      %p138 = por %p136, %p137
      %p139 = scmp.ne.s32.totalorder %s130, %s131
      %p140 = scmp.eq.s32.totalorder %s31, 0
      %p141 = por %p139, %p140
      %p142 = scmp.ne.s32.totalorder %s130, %s131
      %p143 = scmp.eq.s32.totalorder %s32, 1
      %p144 = por %p142, %p143
      %p146 = scmp.ne.s32.totalorder %s131, %s145
      %p147 = scmp.eq.s32.totalorder %s32, 0
      %p148 = por %p146, %p147
      %s150 = sadd.s32 %s149, 1
      %p153 = scmp.eq.s32.totalorder %s26, 1
      %p154 = scmp.ne.s32.totalorder %s149, %s151
      %p155 = scmp.eq.s32.totalorder %s26, 0
      %p156 = por %p154, %p155
      %p157 = scmp.ne.s32.totalorder %s149, %s151
      %p158 = scmp.eq.s32.totalorder %s31, 1
      %p159 = por %p157, %p158
      %p160 = scmp.ne.s32.totalorder %s151, %s152
      %p161 = scmp.eq.s32.totalorder %s31, 0
      %p162 = por %p160, %p161
      %p163 = scmp.ne.s32.totalorder %s151, %s152
      %p164 = scmp.eq.s32.totalorder %s32, 1
      %p165 = por %p163, %p164
      %p167 = scmp.ne.s32.totalorder %s152, %s166
      %p168 = scmp.eq.s32.totalorder %s32, 0
      %p169 = por %p167, %p168
      %s171 = sadd.s32 %s170, 1
      %p174 = scmp.eq.s32.totalorder %s26, 1
      %p175 = scmp.ne.s32.totalorder %s170, %s172
      %p176 = scmp.eq.s32.totalorder %s26, 0
      %p177 = por %p175, %p176
      %p178 = scmp.ne.s32.totalorder %s170, %s172
      %p179 = scmp.eq.s32.totalorder %s31, 1
      %p180 = por %p178, %p179
      %p181 = scmp.ne.s32.totalorder %s172, %s173
      %p182 = scmp.eq.s32.totalorder %s31, 0
      %p183 = por %p181, %p182
      %p184 = scmp.ne.s32.totalorder %s172, %s173
      %p185 = scmp.eq.s32.totalorder %s32, 1
      %p186 = por %p184, %p185
      %p188 = scmp.ne.s32.totalorder %s173, %s187
      %p189 = scmp.eq.s32.totalorder %s32, 0
      %p190 = por %p188, %p189
      %s192 = sadd.s32 %s191, 1
      %p195 = scmp.eq.s32.totalorder %s26, 1
      %p196 = scmp.ne.s32.totalorder %s191, %s193
      %p197 = scmp.eq.s32.totalorder %s26, 0
      %p198 = por %p196, %p197
      %p199 = scmp.ne.s32.totalorder %s191, %s193
      %p200 = scmp.eq.s32.totalorder %s31, 1
      %p201 = por %p199, %p200
      %p202 = scmp.ne.s32.totalorder %s193, %s194
      %p203 = scmp.eq.s32.totalorder %s31, 0
      %p204 = por %p202, %p203
      %p205 = scmp.ne.s32.totalorder %s193, %s194
      %p206 = scmp.eq.s32.totalorder %s32, 1
      %p207 = por %p205, %p206
      %p209 = scmp.ne.s32.totalorder %s194, %s208
      %p210 = scmp.eq.s32.totalorder %s32, 0
      %p211 = por %p209, %p210
      %s213 = sadd.s32 %s212, 1
      %p216 = scmp.eq.s32.totalorder %s26, 1
      %p217 = scmp.ne.s32.totalorder %s212, %s214
      %p218 = scmp.eq.s32.totalorder %s26, 0
      %p219 = por %p217, %p218
      %p220 = scmp.ne.s32.totalorder %s212, %s214
      %p221 = scmp.eq.s32.totalorder %s31, 1
      %p222 = por %p220, %p221
      %p223 = scmp.ne.s32.totalorder %s214, %s215
      %p224 = scmp.eq.s32.totalorder %s31, 0
      %p225 = por %p223, %p224
      %p226 = scmp.ne.s32.totalorder %s214, %s215
      %p227 = scmp.eq.s32.totalorder %s32, 1
      %p228 = por %p226, %p227
      %p230 = scmp.ne.s32.totalorder %s215, %s229
      %p231 = scmp.eq.s32.totalorder %s32, 0
      %p232 = por %p230, %p231
      %s234 = sadd.s32 %s233, 1
      %p237 = scmp.eq.s32.totalorder %s26, 1
      %p238 = scmp.ne.s32.totalorder %s233, %s235
      %p239 = scmp.eq.s32.totalorder %s26, 0
      %p240 = por %p238, %p239
      %p241 = scmp.ne.s32.totalorder %s233, %s235
      %p242 = scmp.eq.s32.totalorder %s31, 1
      %p243 = por %p241, %p242
      %p244 = scmp.ne.s32.totalorder %s235, %s236
      %p245 = scmp.eq.s32.totalorder %s31, 0
      %p246 = por %p244, %p245
      %p247 = scmp.ne.s32.totalorder %s235, %s236
      %p248 = scmp.eq.s32.totalorder %s32, 1
      %p249 = por %p247, %p248
      %p251 = scmp.ne.s32.totalorder %s236, %s250
      %p252 = scmp.eq.s32.totalorder %s32, 0
      %p253 = por %p251, %p252
      %s255 = sadd.s32 %s254, 1
      %p258 = scmp.eq.s32.totalorder %s26, 1
      %p259 = scmp.ne.s32.totalorder %s254, %s256
      %p260 = scmp.eq.s32.totalorder %s26, 0
      %p261 = por %p259, %p260
      %p262 = scmp.ne.s32.totalorder %s254, %s256
      %p263 = scmp.eq.s32.totalorder %s31, 1
      %p264 = por %p262, %p263
      %p265 = scmp.ne.s32.totalorder %s256, %s257
      %p266 = scmp.eq.s32.totalorder %s31, 0
      %p267 = por %p265, %p266
      %p268 = scmp.ne.s32.totalorder %s256, %s257
      %p269 = scmp.eq.s32.totalorder %s32, 1
      %p270 = por %p268, %p269
      %p272 = scmp.ne.s32.totalorder %s257, %s271
      %p273 = scmp.eq.s32.totalorder %s32, 0
      %p274 = por %p272, %p273
      %s276 = sadd.s32 %s275, 1
      %p279 = scmp.eq.s32.totalorder %s26, 1
      %p280 = scmp.ne.s32.totalorder %s275, %s277
      %p281 = scmp.eq.s32.totalorder %s26, 0
      %p282 = por %p280, %p281
      %p283 = scmp.ne.s32.totalorder %s275, %s277
      %p284 = scmp.eq.s32.totalorder %s31, 1
      %p285 = por %p283, %p284
      %p286 = scmp.ne.s32.totalorder %s277, %s278
      %p287 = scmp.eq.s32.totalorder %s31, 0
      %p288 = por %p286, %p287
      %p289 = scmp.ne.s32.totalorder %s277, %s278
      %p290 = scmp.eq.s32.totalorder %s32, 1
      %p291 = por %p289, %p290
      %p293 = scmp.ne.s32.totalorder %s278, %s292
      %p294 = scmp.eq.s32.totalorder %s32, 0
      %p295 = por %p293, %p294
      %s296 = ssub.s32 %s26, %s33
      %p297 = scmp.eq.s32.totalorder %s296, 0
      %s299 = sadd.s32 %s298, 1
      %s300 = scalar_select %p297, %s298, %s299
      %p303 = pneg %p297
      %p304 = scmp.eq.s32.totalorder %s26, 1
      %p305 = por %p303, %p304
      %p306 = scmp.ne.s32.totalorder %s298, %s301
      %p307 = scmp.eq.s32.totalorder %s26, 0
      %p308 = por %p306, %p307
      %p309 = scmp.ne.s32.totalorder %s298, %s301
      %p310 = scmp.eq.s32.totalorder %s31, 1
      %p311 = por %p309, %p310
      %p312 = scmp.ne.s32.totalorder %s301, %s302
      %p313 = scmp.eq.s32.totalorder %s31, 0
      %p314 = por %p312, %p313
      %p315 = scmp.ne.s32.totalorder %s301, %s302
      %p316 = scmp.eq.s32.totalorder %s32, 1
      %p317 = por %p315, %p316
      %p319 = scmp.ne.s32.totalorder %s302, %s318
      %p320 = scmp.eq.s32.totalorder %s32, 0
      %p321 = por %p319, %p320
      %p322 = scmp.le.s32.totalorder 1, %s26
      %p323 = scmp.lt.s32.totalorder %s26, 3
      %p324 = pnand %p322, %p323
      %p325 = pneg %p324
      // Predicated region
      $region9: #{forward.1} parent=5 // pred_check
        _
      $region10: #{forward.1} parent=5 // pred_check_branch
        %327 = sbr.rel (%p324) target = $region12
      $region11: #{forward.1} parent=5 // pred_region
        %s328 = ssub.s32 %s26, 1
        // Predicated region
        $region13: #{forward.1} parent=11 // pred_check
          %p329 = pneg %p99
        $region14: #{forward.1} parent=11 // pred_check_branch
          %331 = sbr.rel (%p329) target = $region16
        $region15: #{forward.1} parent=11 // pred_region
          _
        $region16: #{forward.1} parent=11 // pred_fallthru
          _
        // Predicated region
        $region17: #{forward.1} parent=11 // pred_check
          %p332 = pneg %p120
        $region18: #{forward.1} parent=11 // pred_check_branch
          %334 = sbr.rel (%p332) target = $region20
        $region19: #{forward.1} parent=11 // pred_region
          _
        $region20: #{forward.1} parent=11 // pred_fallthru
          _
        // Predicated region
        $region21: #{forward.1} parent=11 // pred_check
          %p335 = pneg %p141
        $region22: #{forward.1} parent=11 // pred_check_branch
          %337 = sbr.rel (%p335) target = $region24
        $region23: #{forward.1} parent=11 // pred_region
          _
        $region24: #{forward.1} parent=11 // pred_fallthru
          _
        // Predicated region
        $region25: #{forward.1} parent=11 // pred_check
          %p338 = pneg %p162
        $region26: #{forward.1} parent=11 // pred_check_branch
          %340 = sbr.rel (%p338) target = $region28
        $region27: #{forward.1} parent=11 // pred_region
          %s342 = ssub.s32 1024, 1024
          %343 = vsyncadd [#allocation7], %s342
          %s344 = sshll.u32 [#allocation6], 4
          %s345 = int_to_ptr.vmem [resolvable:$true] %s344
          %350 = dma.hbm_to_vmem [thread:$0]  %s6, 1024, %s345, [#allocation7], 64, 64, 4
        $region28: #{forward.1} parent=11 // pred_fallthru
          _
        // Predicated region
        $region29: #{forward.1} parent=11 // pred_check
          %p351 = pneg %p183
        $region30: #{forward.1} parent=11 // pred_check_branch
          %353 = sbr.rel (%p351) target = $region32
        $region31: #{forward.1} parent=11 // pred_region
          _
        $region32: #{forward.1} parent=11 // pred_fallthru
          _
        // Predicated region
        $region33: #{forward.1} parent=11 // pred_check
          %p354 = pneg %p204
        $region34: #{forward.1} parent=11 // pred_check_branch
          %356 = sbr.rel (%p354) target = $region36
        $region35: #{forward.1} parent=11 // pred_region
          _
        $region36: #{forward.1} parent=11 // pred_fallthru
          _
        // Predicated region
        $region37: #{forward.1} parent=11 // pred_check
          %p357 = pneg %p225
        $region38: #{forward.1} parent=11 // pred_check_branch
          %359 = sbr.rel (%p357) target = $region40
        $region39: #{forward.1} parent=11 // pred_region
          _
        $region40: #{forward.1} parent=11 // pred_fallthru
          _
        // Predicated region
        $region41: #{forward.1} parent=11 // pred_check
          %p360 = pneg %p246
        $region42: #{forward.1} parent=11 // pred_check_branch
          %362 = sbr.rel (%p360) target = $region44
        $region43: #{forward.1} parent=11 // pred_region
          _
        $region44: #{forward.1} parent=11 // pred_fallthru
          _
        // Predicated region
        $region45: #{forward.1} parent=11 // pred_check
          %p363 = pneg %p267
        $region46: #{forward.1} parent=11 // pred_check_branch
          %365 = sbr.rel (%p363) target = $region48
        $region47: #{forward.1} parent=11 // pred_region
          _
        $region48: #{forward.1} parent=11 // pred_fallthru
          _
        // Predicated region
        $region49: #{forward.1} parent=11 // pred_check
          %p366 = pneg %p288
        $region50: #{forward.1} parent=11 // pred_check_branch
          %368 = sbr.rel (%p366) target = $region52
        $region51: #{forward.1} parent=11 // pred_region
          _
        $region52: #{forward.1} parent=11 // pred_fallthru
          _
      $region12: #{forward.1} parent=5 // pred_fallthru
        _
      %p369 = scmp.lt.s32.totalorder %s26, 2
      // Predicated region
      $region53: #{forward.1} parent=5 // pred_check
        %p370 = pneg %p369
      $region54: #{forward.1} parent=5 // pred_check_branch
        %372 = sbr.rel (%p370) target = $region56
      $region55: #{forward.1} parent=5 // pred_region
        // Predicated region
        $region57: #{forward.1} parent=55 // pred_check
          %p373 = pneg %p46
        $region58: #{forward.1} parent=55 // pred_check_branch
          %375 = sbr.rel (%p373) target = $region60
        $region59: #{forward.1} parent=55 // pred_region
          %p376 = scmp.lt.s32.totalorder %s26, 1
          %s377 = scalar_select %p376, %s26, 1
          %s378 = smul.addr %s377, 2
          %s379 = smul.addr %s378, 8
          %s380 = scalar_lea.vmem %s1, %s379
        $region60: #{forward.1} parent=55 // pred_fallthru
          _
        // Predicated region
        $region61: #{forward.1} parent=55 // pred_check
          %p381 = pneg %p72
        $region62: #{forward.1} parent=55 // pred_check_branch
          %383 = sbr.rel (%p381) target = $region64
        $region63: #{forward.1} parent=55 // pred_region
          %p384 = scmp.lt.s32.totalorder %s26, 1
          %s385 = scalar_select %p384, %s26, 1
          %s386 = smul.addr %s385, 2
          %s387 = smul.addr %s386, 8
          %s388 = scalar_lea.vmem %s2, %s387
        $region64: #{forward.1} parent=55 // pred_fallthru
          _
      $region56: #{forward.1} parent=5 // pred_fallthru
        _
      %p389 = scmp.le.s32.totalorder 1, %s26
      %p390 = scmp.lt.s32.totalorder %s26, 3
      %p391 = pnand %p389, %p390
      %p392 = pneg %p391
      // Predicated region
      $region65: #{forward.1} parent=5 // pred_check
        _
      $region66: #{forward.1} parent=5 // pred_check_branch
        %394 = sbr.rel (%p391) target = $region68
      $region67: #{forward.1} parent=5 // pred_region
        %s395 = ssub.s32 %s26, 1
        // Predicated region
        $region69: #{forward.1} parent=67 // pred_check
          %p396 = pneg %p162
        $region70: #{forward.1} parent=67 // pred_check_branch
          %398 = sbr.rel (%p396) target = $region72
        $region71: #{forward.1} parent=67 // pred_region
          %399 = dma.done [#allocation7], 1024
        $region72: #{forward.1} parent=67 // pred_fallthru
          _
        %p400 = scmp.lt.s32.totalorder %s31, 1
        %s401 = scalar_select %p400, %s31, 1
        %s402 = smul.addr %s401, 2
        %s403 = smul.addr %s402, 8
        %s404 = scalar_lea.vmem %s1, %s403
        %p405 = pneg %p52
        %p406 = pneg %p49
        %p407 = scmp.lt.s32.totalorder %s31, 1
        %s408 = scalar_select %p407, %s31, 1
        %s409 = smul.addr %s408, 2
        %s410 = smul.addr %s409, 8
        %s411 = scalar_lea.vmem %s2, %s410
        %p412 = pneg %p78
        %p413 = pneg %p75
        %p414 = pneg %p99
        %p415 = pneg %p96
        %p416 = pneg %p120
        %p417 = pneg %p117
        %p418 = pneg %p141
        %p419 = pneg %p138
        %p420 = pneg %p162
        %p421 = pneg %p159
        %p422 = pneg %p183
        %p423 = pneg %p180
        %p424 = pneg %p204
        %p425 = pneg %p201
        %p426 = pneg %p225
        %p427 = pneg %p222
        %p428 = pneg %p246
        %p429 = pneg %p243
        %p430 = pneg %p267
        %p431 = pneg %p264
        %p432 = pneg %p288
        %p433 = pneg %p285
        %p434 = pneg %p314
        %p435 = pneg %p311
        %p436 = scmp.lt.s32.totalorder %s31, 1
        %s437 = scalar_select %p436, %s31, 1
        %s438 = smul.addr %s437, 2
        %s439 = scalar_lea.vmem %s13, %s438
        %p440 = scmp.lt.s32.totalorder %s31, 1
        %s441 = scalar_select %p440, %s31, 1
        %s442 = smul.addr %s441, 2
        %s443 = smul.addr %s442, 8
        %s444 = scalar_lea.vmem %s1, %s443
        %p445 = scmp.lt.s32.totalorder %s31, 1
        %s446 = scalar_select %p445, %s31, 1
        %s447 = smul.addr %s446, 2
        %s448 = smul.addr %s447, 8
        %s449 = scalar_lea.vmem %s2, %s448
        %p450 = scmp.lt.s32.totalorder %s31, 1
        %s451 = scalar_select %p450, %s31, 1
        %s452 = smul.addr %s451, 2
        %s453 = scalar_lea.vmem %s13, %s452
        %v455 = vld [vmem:[%s3] sm:$0xf]
        %v456 = vld [vmem:[%s4] sm:$0xf]
        %v457 = vld [vmem:[%s4 + $0x4] sm:$0xf]
        %v458 = vld [vmem:[%s4 + $0x8] sm:$0xf]
        %v459 = vld [vmem:[%s4 + $0xc] sm:$0xf]
        %v460 = vld [vmem:[%s4 + $0x10] sm:$0xf]
        %v461 = vld [vmem:[%s4 + $0x14] sm:$0xf]
        %v462 = vld [vmem:[%s4 + $0x18] sm:$0xf]
        %v463 = vld [vmem:[%s4 + $0x1c] sm:$0xf]
        %v464 = vld [vmem:[%s4 + $0x20] sm:$0xf]
        %v465 = vld [vmem:[%s4 + $0x24] sm:$0xf]
        %v466 = vld [vmem:[%s4 + $0x28] sm:$0xf]
        %v467 = vld [vmem:[%s4 + $0x2c] sm:$0xf]
        %v468 = vld [vmem:[%s4 + $0x30] sm:$0xf]
        %v469 = vld [vmem:[%s4 + $0x34] sm:$0xf]
        %v470 = vld [vmem:[%s4 + $0x38] sm:$0xf]
        %v471 = vld [vmem:[%s4 + $0x3c] sm:$0xf]
        %v472 = vld [vmem:[%s10] sm:$0x1]
        %v473 = vlaneseq
        %v474 = vshrl.u32 %v473, 7
        %v475 = vsub.s32 0, %v474
        %v476 = vrot.slane %v472, %v475
        %v493 = vunpack.c.l.b16 %v456
        %v494 = vunpack.c.l.b16 %v457
        %v495 = vunpack.c.l.b16 %v458
        %v496 = vunpack.c.l.b16 %v459
        %v497 = vunpack.c.l.b16 %v460
        %v498 = vunpack.c.l.b16 %v461
        %v499 = vunpack.c.l.b16 %v462
        %v500 = vunpack.c.l.b16 %v463
        %v501 = vunpack.c.l.b16 %v464
        %v502 = vunpack.c.l.b16 %v465
        %v503 = vunpack.c.l.b16 %v466
        %v504 = vunpack.c.l.b16 %v467
        %v505 = vunpack.c.l.b16 %v468
        %v506 = vunpack.c.l.b16 %v469
        %v507 = vunpack.c.l.b16 %v470
        %v508 = vunpack.c.l.b16 %v471
        %v509 = vpack.c.b16 %v494, %v493
        %v510 = vpack.c.b16 %v496, %v495
        %v511 = vpack.c.b16 %v498, %v497
        %v512 = vpack.c.b16 %v500, %v499
        %v513 = vpack.c.b16 %v502, %v501
        %v514 = vpack.c.b16 %v504, %v503
        %v515 = vpack.c.b16 %v506, %v505
        %v516 = vpack.c.b16 %v508, %v507
        %525 = vmatprep.subr.bf16.mxu0 0
        %526 = vmatpush1.bf16.msra.mxu0 %v516
        %527 = vmatprep.subr.bf16.mxu0 0
        %528 = vmatpush1.bf16.msra.mxu0 %v515
        %529 = vmatprep.subr.bf16.mxu0 0
        %530 = vmatpush1.bf16.msra.mxu0 %v514
        %531 = vmatprep.subr.bf16.mxu0 0
        %532 = vmatpush1.bf16.msra.mxu0 %v513
        %533 = vmatprep.subr.bf16.mxu0 0
        %534 = vmatpush1.bf16.msra.mxu0 %v512
        %535 = vmatprep.subr.bf16.mxu0 0
        %536 = vmatpush1.bf16.msra.mxu0 %v511
        %537 = vmatprep.subr.bf16.mxu0 0
        %538 = vmatpush1.bf16.msra.mxu0 %v510
        %539 = vmatprep.subr.bf16.mxu0 0
        %540 = vmatpush1.bf16.msra.mxu0 %v509
        %541 = vmatprep.subr.bf16.mxu0 0
        %542 = vmatpush2.bf16.msra.mxu0 0
        %543 = vmatprep.subr.bf16.mxu0 0
        %544 = vmatpush2.bf16.msra.mxu0 0
        %545 = vmatprep.subr.bf16.mxu0 0
        %546 = vmatpush2.bf16.msra.mxu0 0
        %547 = vmatprep.subr.bf16.mxu0 0
        %548 = vmatpush2.bf16.msra.mxu0 0
        %549 = vmatprep.subr.bf16.mxu0 0
        %550 = vmatpush2.bf16.msra.mxu0 0
        %551 = vmatprep.subr.bf16.mxu0 0
        %552 = vmatpush2.bf16.msra.mxu0 0
        %553 = vmatprep.subr.bf16.mxu0 0
        %554 = vmatpush2.bf16.msra.mxu0 0
        %555 = vmatprep.subr.bf16.mxu0 0
        %556 = vmatpush2.bf16.msra.mxu0 0
        %557 = vmatprep.mubr.bf16.mxu0 0
        %558 = vmatmul.mubr.bf16.gmra.mxu0 %v455
        %v559 = vpop.f32.mrf.mxu0
        %v560 = vadd.f32 %v476, %v559
        %v561 = vpop.f32.mrf.mxu0
        %v562 = vpop.f32.mrf.mxu0
        %v563 = vpop.f32.mrf.mxu0
        %564 = vdwg.mxu0
        %v565 = vmax.f32 %v560, 0.0
        %v566 = vpack.c.bf16 %v565, %v565
        %s567 = scalar_lea.vmem %s4, 64
        %v568 = vld [vmem:[%s567] sm:$0xf]
        %v569 = vld [vmem:[%s567 + $0x4] sm:$0xf]
        %v570 = vld [vmem:[%s567 + $0x8] sm:$0xf]
        %v571 = vld [vmem:[%s567 + $0xc] sm:$0xf]
        %v572 = vld [vmem:[%s567 + $0x10] sm:$0xf]
        %v573 = vld [vmem:[%s567 + $0x14] sm:$0xf]
        %v574 = vld [vmem:[%s567 + $0x18] sm:$0xf]
        %v575 = vld [vmem:[%s567 + $0x1c] sm:$0xf]
        %v576 = vld [vmem:[%s567 + $0x20] sm:$0xf]
        %v577 = vld [vmem:[%s567 + $0x24] sm:$0xf]
        %v578 = vld [vmem:[%s567 + $0x28] sm:$0xf]
        %v579 = vld [vmem:[%s567 + $0x2c] sm:$0xf]
        %v580 = vld [vmem:[%s567 + $0x30] sm:$0xf]
        %v581 = vld [vmem:[%s567 + $0x34] sm:$0xf]
        %v582 = vld [vmem:[%s567 + $0x38] sm:$0xf]
        %v583 = vld [vmem:[%s567 + $0x3c] sm:$0xf]
        %v584 = vld [vmem:[%s10 + $0x1] sm:$0x1]
        %v585 = vlaneseq
        %v586 = vshrl.u32 %v585, 7
        %v587 = vsub.s32 0, %v586
        %v588 = vrot.slane %v584, %v587
        %v605 = vunpack.c.l.b16 %v568
        %v606 = vunpack.c.l.b16 %v569
        %v607 = vunpack.c.l.b16 %v570
        %v608 = vunpack.c.l.b16 %v571
        %v609 = vunpack.c.l.b16 %v572
        %v610 = vunpack.c.l.b16 %v573
        %v611 = vunpack.c.l.b16 %v574
        %v612 = vunpack.c.l.b16 %v575
        %v613 = vunpack.c.l.b16 %v576
        %v614 = vunpack.c.l.b16 %v577
        %v615 = vunpack.c.l.b16 %v578
        %v616 = vunpack.c.l.b16 %v579
        %v617 = vunpack.c.l.b16 %v580
        %v618 = vunpack.c.l.b16 %v581
        %v619 = vunpack.c.l.b16 %v582
        %v620 = vunpack.c.l.b16 %v583
        %v621 = vpack.c.b16 %v606, %v605
        %v622 = vpack.c.b16 %v608, %v607
        %v623 = vpack.c.b16 %v610, %v609
        %v624 = vpack.c.b16 %v612, %v611
        %v625 = vpack.c.b16 %v614, %v613
        %v626 = vpack.c.b16 %v616, %v615
        %v627 = vpack.c.b16 %v618, %v617
        %v628 = vpack.c.b16 %v620, %v619
        %637 = vmatprep.subr.bf16.mxu0 0
        %638 = vmatpush1.bf16.msra.mxu0 %v628
        %639 = vmatprep.subr.bf16.mxu0 0
        %640 = vmatpush1.bf16.msra.mxu0 %v627
        %641 = vmatprep.subr.bf16.mxu0 0
        %642 = vmatpush1.bf16.msra.mxu0 %v626
        %643 = vmatprep.subr.bf16.mxu0 0
        %644 = vmatpush1.bf16.msra.mxu0 %v625
        %645 = vmatprep.subr.bf16.mxu0 0
        %646 = vmatpush1.bf16.msra.mxu0 %v624
        %647 = vmatprep.subr.bf16.mxu0 0
        %648 = vmatpush1.bf16.msra.mxu0 %v623
        %649 = vmatprep.subr.bf16.mxu0 0
        %650 = vmatpush1.bf16.msra.mxu0 %v622
        %651 = vmatprep.subr.bf16.mxu0 0
        %652 = vmatpush1.bf16.msra.mxu0 %v621
        %653 = vmatprep.subr.bf16.mxu0 0
        %654 = vmatpush2.bf16.msra.mxu0 0
        %655 = vmatprep.subr.bf16.mxu0 0
        %656 = vmatpush2.bf16.msra.mxu0 0
        %657 = vmatprep.subr.bf16.mxu0 0
        %658 = vmatpush2.bf16.msra.mxu0 0
        %659 = vmatprep.subr.bf16.mxu0 0
        %660 = vmatpush2.bf16.msra.mxu0 0
        %661 = vmatprep.subr.bf16.mxu0 0
        %662 = vmatpush2.bf16.msra.mxu0 0
        %663 = vmatprep.subr.bf16.mxu0 0
        %664 = vmatpush2.bf16.msra.mxu0 0
        %665 = vmatprep.subr.bf16.mxu0 0
        %666 = vmatpush2.bf16.msra.mxu0 0
        %667 = vmatprep.subr.bf16.mxu0 0
        %668 = vmatpush2.bf16.msra.mxu0 0
        %669 = vmatprep.mubr.bf16.mxu0 0
        %670 = vmatmul.mubr.bf16.gmra.mxu0 %v566
        %v671 = vpop.f32.mrf.mxu0
        %v672 = vadd.f32 %v588, %v671
        %v673 = vpop.f32.mrf.mxu0
        %v674 = vpop.f32.mrf.mxu0
        %v675 = vpop.f32.mrf.mxu0
        %676 = vdwg.mxu0
        %677 = vst [vmem:[#allocation2] sm:$0xff] %v672
        %v678 = vld [vmem:[%s444] sm:$0xff]
        %v679 = vld [vmem:[%s444 + $0x8] sm:$0xff]
        %v680 = vld [vmem:[%s449] sm:$0xff]
        %v681 = vld [vmem:[%s449 + $0x8] sm:$0xff]
        %vm682 = vcmp.eq.f32.partialorder %v680, 1.0
        %vm683 = vcmp.eq.f32.partialorder %v681, 1.0
        %v684 = vld [vmem:[#allocation2 + $0x1] sm:$0x1]
        %v685 = vsel %vm682, 1, 0
        %v686 = vsel %vm683, 1, 0
        %687 = vset.pattern.permute.xlu0 0
        %688 = vperm.xlu0 %687, %v685
        %v689 = vpop.permute.xlu0 %688
        %690 = vset.pattern.permute.xlu0 0
        %691 = vperm.xlu0 %690, %v686
        %v692 = vpop.permute.xlu0 %691
        %vm693 = vcmp.eq.s32.totalorder %v689, 1
        %vm694 = vcmp.eq.s32.totalorder %v692, 1
        %v695 = vlaneseq
        %v696 = vshrl.u32 %v695, 7
        %v697 = vsub.s32 0, %v696
        %v698 = vrot.slane %v684, %v697
        %v699 = vsel %vm693, %v698, %v678
        %v700 = vsel %vm694, %v698, %v679
        %vm701 = vcmp.eq.f32.partialorder %v680, 2.0
        %vm702 = vcmp.eq.f32.partialorder %v681, 2.0
        %v703 = vld [vmem:[#allocation2 + $0x2] sm:$0x1]
        %v704 = vsel %vm701, 1, 0
        %v705 = vsel %vm702, 1, 0
        %706 = vset.pattern.permute.xlu0 0
        %707 = vperm.xlu0 %706, %v704
        %v708 = vpop.permute.xlu0 %707
        %709 = vset.pattern.permute.xlu0 0
        %710 = vperm.xlu0 %709, %v705
        %v711 = vpop.permute.xlu0 %710
        %vm712 = vcmp.eq.s32.totalorder %v708, 1
        %vm713 = vcmp.eq.s32.totalorder %v711, 1
        %v714 = vlaneseq
        %v715 = vshrl.u32 %v714, 7
        %v716 = vsub.s32 0, %v715
        %v717 = vrot.slane %v703, %v716
        %v718 = vsel %vm712, %v717, %v699
        %v719 = vsel %vm713, %v717, %v700
        %vm720 = vcmp.eq.f32.partialorder %v680, 3.0
        %vm721 = vcmp.eq.f32.partialorder %v681, 3.0
        %v722 = vld [vmem:[#allocation2 + $0x3] sm:$0x1]
        %v723 = vsel %vm720, 1, 0
        %v724 = vsel %vm721, 1, 0
        %725 = vset.pattern.permute.xlu0 0
        %726 = vperm.xlu0 %725, %v723
        %v727 = vpop.permute.xlu0 %726
        %728 = vset.pattern.permute.xlu0 0
        %729 = vperm.xlu0 %728, %v724
        %v730 = vpop.permute.xlu0 %729
        %vm731 = vcmp.eq.s32.totalorder %v727, 1
        %vm732 = vcmp.eq.s32.totalorder %v730, 1
        %v733 = vlaneseq
        %v734 = vshrl.u32 %v733, 7
        %v735 = vsub.s32 0, %v734
        %v736 = vrot.slane %v722, %v735
        %v737 = vsel %vm731, %v736, %v718
        %v738 = vsel %vm732, %v736, %v719
        %vm739 = vcmp.eq.f32.partialorder %v680, 4.0
        %vm740 = vcmp.eq.f32.partialorder %v681, 4.0
        %v741 = vld [vmem:[#allocation2 + $0x4] sm:$0x1]
        %v742 = vsel %vm739, 1, 0
        %v743 = vsel %vm740, 1, 0
        %744 = vset.pattern.permute.xlu0 0
        %745 = vperm.xlu0 %744, %v742
        %v746 = vpop.permute.xlu0 %745
        %747 = vset.pattern.permute.xlu0 0
        %748 = vperm.xlu0 %747, %v743
        %v749 = vpop.permute.xlu0 %748
        %vm750 = vcmp.eq.s32.totalorder %v746, 1
        %vm751 = vcmp.eq.s32.totalorder %v749, 1
        %v752 = vlaneseq
        %v753 = vshrl.u32 %v752, 7
        %v754 = vsub.s32 0, %v753
        %v755 = vrot.slane %v741, %v754
        %v756 = vsel %vm750, %v755, %v737
        %v757 = vsel %vm751, %v755, %v738
        %vm758 = vcmp.eq.f32.partialorder %v680, 5.0
        %vm759 = vcmp.eq.f32.partialorder %v681, 5.0
        %v760 = vld [vmem:[#allocation2 + $0x5] sm:$0x1]
        %v761 = vsel %vm758, 1, 0
        %v762 = vsel %vm759, 1, 0
        %763 = vset.pattern.permute.xlu0 0
        %764 = vperm.xlu0 %763, %v761
        %v765 = vpop.permute.xlu0 %764
        %766 = vset.pattern.permute.xlu0 0
        %767 = vperm.xlu0 %766, %v762
        %v768 = vpop.permute.xlu0 %767
        %vm769 = vcmp.eq.s32.totalorder %v765, 1
        %vm770 = vcmp.eq.s32.totalorder %v768, 1
        %v771 = vlaneseq
        %v772 = vshrl.u32 %v771, 7
        %v773 = vsub.s32 0, %v772
        %v774 = vrot.slane %v760, %v773
        %v775 = vsel %vm769, %v774, %v756
        %v776 = vsel %vm770, %v774, %v757
        %vm777 = vcmp.eq.f32.partialorder %v680, 6.0
        %vm778 = vcmp.eq.f32.partialorder %v681, 6.0
        %v779 = vld [vmem:[#allocation2 + $0x6] sm:$0x1]
        %v780 = vsel %vm777, 1, 0
        %v781 = vsel %vm778, 1, 0
        %782 = vset.pattern.permute.xlu0 0
        %783 = vperm.xlu0 %782, %v780
        %v784 = vpop.permute.xlu0 %783
        %785 = vset.pattern.permute.xlu0 0
        %786 = vperm.xlu0 %785, %v781
        %v787 = vpop.permute.xlu0 %786
        %vm788 = vcmp.eq.s32.totalorder %v784, 1
        %vm789 = vcmp.eq.s32.totalorder %v787, 1
        %v790 = vlaneseq
        %v791 = vshrl.u32 %v790, 7
        %v792 = vsub.s32 0, %v791
        %v793 = vrot.slane %v779, %v792
        %v794 = vsel %vm788, %v793, %v775
        %v795 = vsel %vm789, %v793, %v776
        %vm796 = vcmp.eq.f32.partialorder %v680, 7.0
        %vm797 = vcmp.eq.f32.partialorder %v681, 7.0
        %v798 = vld [vmem:[#allocation2 + $0x7] sm:$0x1]
        %v799 = vsel %vm796, 1, 0
        %v800 = vsel %vm797, 1, 0
        %801 = vset.pattern.permute.xlu0 0
        %802 = vperm.xlu0 %801, %v799
        %v803 = vpop.permute.xlu0 %802
        %804 = vset.pattern.permute.xlu0 0
        %805 = vperm.xlu0 %804, %v800
        %v806 = vpop.permute.xlu0 %805
        %vm807 = vcmp.eq.s32.totalorder %v803, 1
        %vm808 = vcmp.eq.s32.totalorder %v806, 1
        %v809 = vlaneseq
        %v810 = vshrl.u32 %v809, 7
        %v811 = vsub.s32 0, %v810
        %v812 = vrot.slane %v798, %v811
        %v813 = vsel %vm807, %v812, %v794
        %v814 = vsel %vm808, %v812, %v795
        %v815 = vld [vmem:[%s11] sm:$0xff]
        %v816 = vld [vmem:[%s11 + $0x8] sm:$0xff]
        %v817 = vadd.f32 %v813, %v815
        %v818 = vadd.f32 %v814, %v816
        %v819 = vld [vmem:[%s11 + $0x11] sm:$0x1]
        %821 = vset.pattern.permute.xlu0 1
        %822 = vperm.xlu0 %821, %v680
        %v823 = vpop.permute.xlu0 %822
        %826 = vset.pattern.permute.xlu0 1
        %827 = vperm.xlu0 %826, %v681
        %v828 = vpop.permute.xlu0 %827
        %v830 = vlaneseq
        %v831 = vshrl.u32 %v830, 7
        %v832 = vsub.s32 0, %v831
        %v833 = vrot.slane %v819, %v832
        %v834 = vmul.f32 %v823, %v833
        %v835 = vmul.f32 %v828, %v833
        %v836 = vadd.f32 %v817, %v834
        %v837 = vadd.f32 %v818, %v835
        %v838 = vsub.f32 1.0, %v680
        %v839 = vsub.f32 1.0, %v681
        %v840 = vld [vmem:[%s11 + $0x10] sm:$0x1]
        %842 = vset.pattern.permute.xlu0 1
        %843 = vperm.xlu0 %842, %v838
        %v844 = vpop.permute.xlu0 %843
        %847 = vset.pattern.permute.xlu0 1
        %848 = vperm.xlu0 %847, %v839
        %v849 = vpop.permute.xlu0 %848
        %v851 = vlaneseq
        %v852 = vshrl.u32 %v851, 7
        %v853 = vsub.s32 0, %v852
        %v854 = vrot.slane %v840, %v853
        %v855 = vmul.f32 %v844, %v854
        %v856 = vmul.f32 %v849, %v854
        %v857 = vadd.f32 %v836, %v855
        %v858 = vadd.f32 %v837, %v856
        %v859 = vpack.c.bf16 %v858, %v857
        %v860 = vld [vmem:[%s5] sm:$0xff]
        %v861 = vld [vmem:[%s5 + $0x8] sm:$0xf]
        %v862 = vld [vmem:[%s5 + $0xc] sm:$0xff]
        %v863 = vld [vmem:[%s5 + $0x14] sm:$0xf]
        %v864 = vld [vmem:[%s5 + $0x18] sm:$0xff]
        %v865 = vld [vmem:[%s5 + $0x20] sm:$0xf]
        %v866 = vld [vmem:[%s5 + $0x24] sm:$0xff]
        %v867 = vld [vmem:[%s5 + $0x2c] sm:$0xf]
        %v868 = vld [vmem:[%s5 + $0x30] sm:$0xff]
        %v869 = vld [vmem:[%s5 + $0x38] sm:$0xf]
        %v870 = vld [vmem:[%s5 + $0x3c] sm:$0xff]
        %v871 = vld [vmem:[%s5 + $0x44] sm:$0xf]
        %v872 = vld [vmem:[%s5 + $0x48] sm:$0xff]
        %v873 = vld [vmem:[%s5 + $0x50] sm:$0xf]
        %v874 = vld [vmem:[%s5 + $0x54] sm:$0xff]
        %v875 = vld [vmem:[%s5 + $0x5c] sm:$0xf]
        %v876 = vld [vmem:[%s5 + $0x60] sm:$0xff]
        %v877 = vld [vmem:[%s5 + $0x68] sm:$0xf]
        %v878 = vld [vmem:[%s5 + $0x6c] sm:$0xff]
        %v879 = vld [vmem:[%s5 + $0x74] sm:$0xf]
        %v880 = vld [vmem:[%s5 + $0x78] sm:$0xff]
        %v881 = vld [vmem:[%s5 + $0x80] sm:$0xf]
        %v882 = vld [vmem:[%s5 + $0x84] sm:$0xff]
        %v883 = vld [vmem:[%s5 + $0x8c] sm:$0xf]
        %v884 = vld [vmem:[%s5 + $0x90] sm:$0xff]
        %v885 = vld [vmem:[%s5 + $0x98] sm:$0xf]
        %v886 = vld [vmem:[%s5 + $0x9c] sm:$0xff]
        %v887 = vld [vmem:[%s5 + $0xa4] sm:$0xf]
        %v888 = vld [vmem:[%s5 + $0xa8] sm:$0xff]
        %v889 = vld [vmem:[%s5 + $0xb0] sm:$0xf]
        %v890 = vld [vmem:[%s5 + $0xb4] sm:$0xff]
        %v891 = vld [vmem:[%s5 + $0xbc] sm:$0xf]
        %v924 = vunpack.c.l.b16 %v860
        %v925 = vunpack.c.h.b16 %v860
        %v926 = vunpack.c.l.b16 %v861
        %v927 = vunpack.c.l.b16 %v862
        %v928 = vunpack.c.h.b16 %v862
        %v929 = vunpack.c.l.b16 %v863
        %v930 = vunpack.c.l.b16 %v864
        %v931 = vunpack.c.h.b16 %v864
        %v932 = vunpack.c.l.b16 %v865
        %v933 = vunpack.c.l.b16 %v866
        %v934 = vunpack.c.h.b16 %v866
        %v935 = vunpack.c.l.b16 %v867
        %v936 = vunpack.c.l.b16 %v868
        %v937 = vunpack.c.h.b16 %v868
        %v938 = vunpack.c.l.b16 %v869
        %v939 = vunpack.c.l.b16 %v870
        %v940 = vunpack.c.h.b16 %v870
        %v941 = vunpack.c.l.b16 %v871
        %v942 = vunpack.c.l.b16 %v872
        %v943 = vunpack.c.h.b16 %v872
        %v944 = vunpack.c.l.b16 %v873
        %v945 = vunpack.c.l.b16 %v874
        %v946 = vunpack.c.h.b16 %v874
        %v947 = vunpack.c.l.b16 %v875
        %v948 = vunpack.c.l.b16 %v876
        %v949 = vunpack.c.h.b16 %v876
        %v950 = vunpack.c.l.b16 %v877
        %v951 = vunpack.c.l.b16 %v878
        %v952 = vunpack.c.h.b16 %v878
        %v953 = vunpack.c.l.b16 %v879
        %v954 = vunpack.c.l.b16 %v880
        %v955 = vunpack.c.h.b16 %v880
        %v956 = vunpack.c.l.b16 %v881
        %v957 = vunpack.c.l.b16 %v882
        %v958 = vunpack.c.h.b16 %v882
        %v959 = vunpack.c.l.b16 %v883
        %v960 = vunpack.c.l.b16 %v884
        %v961 = vunpack.c.h.b16 %v884
        %v962 = vunpack.c.l.b16 %v885
        %v963 = vunpack.c.l.b16 %v886
        %v964 = vunpack.c.h.b16 %v886
        %v965 = vunpack.c.l.b16 %v887
        %v966 = vunpack.c.l.b16 %v888
        %v967 = vunpack.c.h.b16 %v888
        %v968 = vunpack.c.l.b16 %v889
        %v969 = vunpack.c.l.b16 %v890
        %v970 = vunpack.c.h.b16 %v890
        %v971 = vunpack.c.l.b16 %v891
        %v972 = vpack.c.b16 %v927, %v924
        %v973 = vpack.c.b16 %v928, %v925
        %v974 = vpack.c.b16 %v929, %v926
        %v975 = vpack.c.b16 %v933, %v930
        %v976 = vpack.c.b16 %v934, %v931
        %v977 = vpack.c.b16 %v935, %v932
        %v978 = vpack.c.b16 %v939, %v936
        %v979 = vpack.c.b16 %v940, %v937
        %v980 = vpack.c.b16 %v941, %v938
        %v981 = vpack.c.b16 %v945, %v942
        %v982 = vpack.c.b16 %v946, %v943
        %v983 = vpack.c.b16 %v947, %v944
        %v984 = vpack.c.b16 %v951, %v948
        %v985 = vpack.c.b16 %v952, %v949
        %v986 = vpack.c.b16 %v953, %v950
        %v987 = vpack.c.b16 %v957, %v954
        %v988 = vpack.c.b16 %v958, %v955
        %v989 = vpack.c.b16 %v959, %v956
        %v990 = vpack.c.b16 %v963, %v960
        %v991 = vpack.c.b16 %v964, %v961
        %v992 = vpack.c.b16 %v965, %v962
        %v993 = vpack.c.b16 %v969, %v966
        %v994 = vpack.c.b16 %v970, %v967
        %v995 = vpack.c.b16 %v971, %v968
        %1020 = vmatprep.subr.bf16.mxu0 %v994
        %1021 = vmatpush1.bf16.msra.mxu0 %v993
        %1022 = vmatprep.subr.bf16.mxu0 %v991
        %1023 = vmatpush1.bf16.msra.mxu0 %v990
        %1024 = vmatprep.subr.bf16.mxu0 %v988
        %1025 = vmatpush1.bf16.msra.mxu0 %v987
        %1026 = vmatprep.subr.bf16.mxu0 %v985
        %1027 = vmatpush1.bf16.msra.mxu0 %v984
        %1028 = vmatprep.subr.bf16.mxu0 %v982
        %1029 = vmatpush1.bf16.msra.mxu0 %v981
        %1030 = vmatprep.subr.bf16.mxu0 %v979
        %1031 = vmatpush1.bf16.msra.mxu0 %v978
        %1032 = vmatprep.subr.bf16.mxu0 %v976
        %1033 = vmatpush1.bf16.msra.mxu0 %v975
        %1034 = vmatprep.subr.bf16.mxu0 %v973
        %1035 = vmatpush1.bf16.msra.mxu0 %v972
        %1036 = vmatprep.subr.bf16.mxu0 0
        %1037 = vmatpush2.bf16.msra.mxu0 0
        %1038 = vmatprep.subr.bf16.mxu0 0
        %1039 = vmatpush2.bf16.msra.mxu0 0
        %1040 = vmatprep.subr.bf16.mxu0 0
        %1041 = vmatpush2.bf16.msra.mxu0 0
        %1042 = vmatprep.subr.bf16.mxu0 0
        %1043 = vmatpush2.bf16.msra.mxu0 0
        %1044 = vmatprep.subr.bf16.mxu0 0
        %1045 = vmatpush2.bf16.msra.mxu0 0
        %1046 = vmatprep.subr.bf16.mxu0 0
        %1047 = vmatpush2.bf16.msra.mxu0 0
        %1048 = vmatprep.subr.bf16.mxu0 0
        %1049 = vmatpush2.bf16.msra.mxu0 0
        %1050 = vmatprep.subr.bf16.mxu0 0
        %1051 = vmatpush2.bf16.msra.mxu0 0
        %1052 = vmatprep.mubr.bf16.mxu0 0
        %1053 = vmatmul.mubr.bf16.gmra.mxu0 %v859
        %v1054 = vpop.f32.mrf.mxu0
        %v1055 = vadd.f32 0.0, %v1054
        %v1056 = vpop.f32.mrf.mxu0
        %v1057 = vadd.f32 0.0, %v1056
        %v1058 = vpop.f32.mrf.mxu0
        %v1059 = vadd.f32 0.0, %v1058
        %v1060 = vpop.f32.mrf.mxu0
        %v1061 = vadd.f32 0.0, %v1060
        %1062 = vdwg.mxu0
        %1063 = vmatprep.subr.bf16.mxu0 0
        %1064 = vmatpush1.bf16.msra.mxu0 %v995
        %1065 = vmatprep.subr.bf16.mxu0 0
        %1066 = vmatpush1.bf16.msra.mxu0 %v992
        %1067 = vmatprep.subr.bf16.mxu0 0
        %1068 = vmatpush1.bf16.msra.mxu0 %v989
        %1069 = vmatprep.subr.bf16.mxu0 0
        %1070 = vmatpush1.bf16.msra.mxu0 %v986
        %1071 = vmatprep.subr.bf16.mxu0 0
        %1072 = vmatpush1.bf16.msra.mxu0 %v983
        %1073 = vmatprep.subr.bf16.mxu0 0
        %1074 = vmatpush1.bf16.msra.mxu0 %v980
        %1075 = vmatprep.subr.bf16.mxu0 0
        %1076 = vmatpush1.bf16.msra.mxu0 %v977
        %1077 = vmatprep.subr.bf16.mxu0 0
        %1078 = vmatpush1.bf16.msra.mxu0 %v974
        %1079 = vmatprep.subr.bf16.mxu0 0
        %1080 = vmatpush2.bf16.msra.mxu0 0
        %1081 = vmatprep.subr.bf16.mxu0 0
        %1082 = vmatpush2.bf16.msra.mxu0 0
        %1083 = vmatprep.subr.bf16.mxu0 0
        %1084 = vmatpush2.bf16.msra.mxu0 0
        %1085 = vmatprep.subr.bf16.mxu0 0
        %1086 = vmatpush2.bf16.msra.mxu0 0
        %1087 = vmatprep.subr.bf16.mxu0 0
        %1088 = vmatpush2.bf16.msra.mxu0 0
        %1089 = vmatprep.subr.bf16.mxu0 0
        %1090 = vmatpush2.bf16.msra.mxu0 0
        %1091 = vmatprep.subr.bf16.mxu0 0
        %1092 = vmatpush2.bf16.msra.mxu0 0
        %1093 = vmatprep.subr.bf16.mxu0 0
        %1094 = vmatpush2.bf16.msra.mxu0 0
        %1095 = vmatprep.mubr.bf16.mxu0 0
        %1096 = vmatmul.mubr.bf16.gmra.mxu0 %v859
        %v1097 = vpop.f32.mrf.mxu0
        %v1098 = vadd.f32 0.0, %v1097
        %v1099 = vpop.f32.mrf.mxu0
        %v1100 = vpop.f32.mrf.mxu0
        %v1101 = vadd.f32 0.0, %v1100
        %v1102 = vpop.f32.mrf.mxu0
        %1103 = vdwg.mxu0
        %v1104 = vpack.c.bf16 %v1059, %v1055
        %v1105 = vpack.c.bf16 %v1061, %v1057
        %v1106 = vpack.c.bf16 %v1101, %v1098
        %1107 = vmatprep.subr.bf16.mxu0 0
        %1108 = vmatpush1.bf16.xpose.msra.mxu0 0
        %1109 = vmatprep.subr.bf16.mxu0 0
        %1110 = vmatpush1.bf16.xpose.msra.mxu0 0
        %1111 = vmatprep.subr.bf16.mxu0 0
        %1112 = vmatpush1.bf16.xpose.msra.mxu0 0
        %1113 = vmatprep.subr.bf16.mxu0 0
        %1114 = vmatpush1.bf16.xpose.msra.mxu0 0
        %1115 = vmatprep.subr.bf16.mxu0 0
        %1116 = vmatpush1.bf16.xpose.msra.mxu0 0
        %1117 = vmatprep.subr.bf16.mxu0 0
        %1118 = vmatpush1.bf16.xpose.msra.mxu0 0
        %1119 = vmatprep.subr.bf16.mxu0 0
        %1120 = vmatpush1.bf16.xpose.msra.mxu0 0
        %1121 = vmatprep.subr.bf16.mxu0 0
        %1122 = vmatpush1.bf16.xpose.msra.mxu0 %v1105
        %1123 = vmatprep.subr.bf16.mxu0 0
        %1124 = vmatpush2.bf16.xpose.msra.mxu0 0
        %1125 = vmatprep.subr.bf16.mxu0 0
        %1126 = vmatpush2.bf16.xpose.msra.mxu0 0
        %1127 = vmatprep.subr.bf16.mxu0 0
        %1128 = vmatpush2.bf16.xpose.msra.mxu0 0
        %1129 = vmatprep.subr.bf16.mxu0 0
        %1130 = vmatpush2.bf16.xpose.msra.mxu0 0
        %1131 = vmatprep.subr.bf16.mxu0 0
        %1132 = vmatpush2.bf16.xpose.msra.mxu0 0
        %1133 = vmatprep.subr.bf16.mxu0 0
        %1134 = vmatpush2.bf16.xpose.msra.mxu0 0
        %1135 = vmatprep.subr.bf16.mxu0 0
        %1136 = vmatpush2.bf16.xpose.msra.mxu0 0
        %1137 = vmatprep.subr.bf16.mxu0 0
        %1138 = vmatpush2.bf16.xpose.msra.mxu0 0
        %1139 = vmatprep.mubr.bf16.mxu0 0
        %1140 = vmatmul.mubr.bf16.gmra.mxu0 %v1104
        %v1141 = vpop.f32.mrf.mxu0
        %v1142 = vadd.f32 0.0, %v1141
        %v1143 = vpop.f32.mrf.mxu0
        %v1144 = vpop.f32.mrf.mxu0
        %v1145 = vadd.f32 0.0, %v1144
        %v1146 = vpop.f32.mrf.mxu0
        %1147 = vdwg.mxu0
        %v1148 = vmul.f32 %v1142, 0.088388346
        %v1149 = vmul.f32 %v1145, 0.088388346
        %1150 = vrot.lane.b32.xlu0 %v680, 126
        %v1151 = vpop.permute.xlu0 %1150
        %1152 = vrot.lane.b32.xlu0 %v681, 126
        %v1153 = vpop.permute.xlu0 %1152
        %1156 = vxpose.xlu0.b32.start [1/16] %v1151, 128
        %1157 = vxpose.xlu0.b32.cont [2/16] %v1153, 128
        %1158 = vxpose.xlu0.b32.cont [3/16] 0.0, 128
        %1159 = vxpose.xlu0.b32.cont [4/16] 0.0, 128
        %1160 = vxpose.xlu0.b32.cont [5/16] 0.0, 128
        %1161 = vxpose.xlu0.b32.cont [6/16] 0.0, 128
        %1162 = vxpose.xlu0.b32.cont [7/16] 0.0, 128
        %1163 = vxpose.xlu0.b32.cont [8/16] 0.0, 128
        %1164 = vxpose.xlu0.b32.cont [9/16] 0.0, 128
        %1165 = vxpose.xlu0.b32.cont [10/16] 0.0, 128
        %1166 = vxpose.xlu0.b32.cont [11/16] 0.0, 128
        %1167 = vxpose.xlu0.b32.cont [12/16] 0.0, 128
        %1168 = vxpose.xlu0.b32.cont [13/16] 0.0, 128
        %1169 = vxpose.xlu0.b32.cont [14/16] 0.0, 128
        %1170 = vxpose.xlu0.b32.cont [15/16] 0.0, 128
        %1171 = vxpose.xlu0.b32.end [16/16] 0.0, 128
        %v1172 = vpop.trf.xlu0
        %v1173 = vpop.trf.xlu0
        %v1174 = vpop.trf.xlu0
        %v1175 = vpop.trf.xlu0
        %v1176 = vpop.trf.xlu0
        %v1177 = vpop.trf.xlu0
        %v1178 = vpop.trf.xlu0
        %v1179 = vpop.trf.xlu0
        %v1180 = vpop.trf.xlu0
        %v1181 = vpop.trf.xlu0
        %v1182 = vpop.trf.xlu0
        %v1183 = vpop.trf.xlu0
        %v1184 = vpop.trf.xlu0
        %v1185 = vpop.trf.xlu0
        %v1186 = vpop.trf.xlu0
        %v1187 = vpop.trf.xlu0
        %v1188 = vsub.f32 1.0, %v1172
        %v1189 = vmul.f32 %v1188, -1e+09
        %v1190 = vlaneseq
        %v1191 = vshrl.u32 %v1190, 7
        %v1192 = vsub.s32 0, %v1191
        %v1193 = vrot.slane %v1189, %v1192
        %v1194 = vadd.f32 %v1148, %v1193
        %v1195 = vadd.f32 %v1149, %v1193
        %vm1196 = vcmask 130048
        %v1197 = vsel %vm1196, %v1194, -inf
        %1198 = vmax.xlane.f32.xlu0 %v1197
        %v1199 = vpop.xlane.xlu0 %1198
        %v1200 = vsel %vm1196, %v1195, -inf
        %1201 = vmax.xlane.f32.xlu0 %v1200
        %v1202 = vpop.xlane.xlu0 %1201
        %v1203 = vsub.f32 %v1194, %v1199
        %v1204 = vsub.f32 %v1195, %v1202
        %v1205 = vmul.f32 %v1203, 1.442695
        %v1206 = vpow.pop %v1205
        %v1207 = vmul.f32 %v1204, 1.442695
        %v1208 = vpow.pop %v1207
        %v1209 = vsel %vm1196, %v1206, 0.0
        %1210 = vadd.xlane.f32.xlu0 %v1209
        %v1211 = vpop.xlane.xlu0 %1210
        %v1212 = vsel %vm1196, %v1208, 0.0
        %1213 = vadd.xlane.f32.xlu0 %v1212
        %v1214 = vpop.xlane.xlu0 %1213
        %v1215 = vrcp.pop %v1211
        %v1216 = vrcp.pop %v1214
        %v1217 = vmul.f32 %v1206, %v1215
        %v1218 = vmul.f32 %v1208, %v1216
        %v1219 = vpack.c.bf16 %v1218, %v1217
        %v1221 = vsel %vm1196, %v1219, 0
        %1223 = vmatprep.subr.bf16.mxu0 0
        %1224 = vmatpush1.bf16.msra.mxu0 0
        %1225 = vmatprep.subr.bf16.mxu0 0
        %1226 = vmatpush1.bf16.msra.mxu0 0
        %1227 = vmatprep.subr.bf16.mxu0 0
        %1228 = vmatpush1.bf16.msra.mxu0 0
        %1229 = vmatprep.subr.bf16.mxu0 0
        %1230 = vmatpush1.bf16.msra.mxu0 0
        %1231 = vmatprep.subr.bf16.mxu0 0
        %1232 = vmatpush1.bf16.msra.mxu0 0
        %1233 = vmatprep.subr.bf16.mxu0 0
        %1234 = vmatpush1.bf16.msra.mxu0 0
        %1235 = vmatprep.subr.bf16.mxu0 0
        %1236 = vmatpush1.bf16.msra.mxu0 0
        %1237 = vmatprep.subr.bf16.mxu0 0
        %1238 = vmatpush1.bf16.msra.mxu0 %v1106
        %1239 = vmatprep.subr.bf16.mxu0 0
        %1240 = vmatpush2.bf16.msra.mxu0 0
        %1241 = vmatprep.subr.bf16.mxu0 0
        %1242 = vmatpush2.bf16.msra.mxu0 0
        %1243 = vmatprep.subr.bf16.mxu0 0
        %1244 = vmatpush2.bf16.msra.mxu0 0
        %1245 = vmatprep.subr.bf16.mxu0 0
        %1246 = vmatpush2.bf16.msra.mxu0 0
        %1247 = vmatprep.subr.bf16.mxu0 0
        %1248 = vmatpush2.bf16.msra.mxu0 0
        %1249 = vmatprep.subr.bf16.mxu0 0
        %1250 = vmatpush2.bf16.msra.mxu0 0
        %1251 = vmatprep.subr.bf16.mxu0 0
        %1252 = vmatpush2.bf16.msra.mxu0 0
        %1253 = vmatprep.subr.bf16.mxu0 0
        %1254 = vmatpush2.bf16.msra.mxu0 0
        %1255 = vmatprep.mubr.bf16.mxu0 0
        %1256 = vmatmul.mubr.bf16.gmra.mxu0 %v1221
        %v1257 = vpop.f32.mrf.mxu0
        %v1258 = vadd.f32 0.0, %v1257
        %v1259 = vpop.f32.mrf.mxu0
        %v1260 = vpop.f32.mrf.mxu0
        %v1261 = vadd.f32 0.0, %v1260
        %v1262 = vpop.f32.mrf.mxu0
        %1263 = vdwg.mxu0
        %v1264 = vpack.c.bf16 %v1261, %v1258
        %v1265 = vld [vmem:[#allocation6] sm:$0xf]
        %v1266 = vld [vmem:[#allocation6 + $0x4] sm:$0xf]
        %v1267 = vld [vmem:[#allocation6 + $0x8] sm:$0xf]
        %v1268 = vld [vmem:[#allocation6 + $0xc] sm:$0xf]
        %v1269 = vld [vmem:[#allocation6 + $0x10] sm:$0xf]
        %v1270 = vld [vmem:[#allocation6 + $0x14] sm:$0xf]
        %v1271 = vld [vmem:[#allocation6 + $0x18] sm:$0xf]
        %v1272 = vld [vmem:[#allocation6 + $0x1c] sm:$0xf]
        %v1273 = vld [vmem:[#allocation6 + $0x20] sm:$0xf]
        %v1274 = vld [vmem:[#allocation6 + $0x24] sm:$0xf]
        %v1275 = vld [vmem:[#allocation6 + $0x28] sm:$0xf]
        %v1276 = vld [vmem:[#allocation6 + $0x2c] sm:$0xf]
        %v1277 = vld [vmem:[#allocation6 + $0x30] sm:$0xf]
        %v1278 = vld [vmem:[#allocation6 + $0x34] sm:$0xf]
        %v1279 = vld [vmem:[#allocation6 + $0x38] sm:$0xf]
        %v1280 = vld [vmem:[#allocation6 + $0x3c] sm:$0xf]
        %v1297 = vunpack.c.l.b16 %v1265
        %v1298 = vunpack.c.l.b16 %v1266
        %v1299 = vunpack.c.l.b16 %v1267
        %v1300 = vunpack.c.l.b16 %v1268
        %v1301 = vunpack.c.l.b16 %v1269
        %v1302 = vunpack.c.l.b16 %v1270
        %v1303 = vunpack.c.l.b16 %v1271
        %v1304 = vunpack.c.l.b16 %v1272
        %v1305 = vunpack.c.l.b16 %v1273
        %v1306 = vunpack.c.l.b16 %v1274
        %v1307 = vunpack.c.l.b16 %v1275
        %v1308 = vunpack.c.l.b16 %v1276
        %v1309 = vunpack.c.l.b16 %v1277
        %v1310 = vunpack.c.l.b16 %v1278
        %v1311 = vunpack.c.l.b16 %v1279
        %v1312 = vunpack.c.l.b16 %v1280
        %v1313 = vpack.c.b16 %v1298, %v1297
        %v1314 = vpack.c.b16 %v1300, %v1299
        %v1315 = vpack.c.b16 %v1302, %v1301
        %v1316 = vpack.c.b16 %v1304, %v1303
        %v1317 = vpack.c.b16 %v1306, %v1305
        %v1318 = vpack.c.b16 %v1308, %v1307
        %v1319 = vpack.c.b16 %v1310, %v1309
        %v1320 = vpack.c.b16 %v1312, %v1311
        %1329 = vmatprep.subr.bf16.mxu0 0
        %1330 = vmatpush1.bf16.msra.mxu0 %v1320
        %1331 = vmatprep.subr.bf16.mxu0 0
        %1332 = vmatpush1.bf16.msra.mxu0 %v1319
        %1333 = vmatprep.subr.bf16.mxu0 0
        %1334 = vmatpush1.bf16.msra.mxu0 %v1318
        %1335 = vmatprep.subr.bf16.mxu0 0
        %1336 = vmatpush1.bf16.msra.mxu0 %v1317
        %1337 = vmatprep.subr.bf16.mxu0 0
        %1338 = vmatpush1.bf16.msra.mxu0 %v1316
        %1339 = vmatprep.subr.bf16.mxu0 0
        %1340 = vmatpush1.bf16.msra.mxu0 %v1315
        %1341 = vmatprep.subr.bf16.mxu0 0
        %1342 = vmatpush1.bf16.msra.mxu0 %v1314
        %1343 = vmatprep.subr.bf16.mxu0 0
        %1344 = vmatpush1.bf16.msra.mxu0 %v1313
        %1345 = vmatprep.subr.bf16.mxu0 0
        %1346 = vmatpush2.bf16.msra.mxu0 0
        %1347 = vmatprep.subr.bf16.mxu0 0
        %1348 = vmatpush2.bf16.msra.mxu0 0
        %1349 = vmatprep.subr.bf16.mxu0 0
        %1350 = vmatpush2.bf16.msra.mxu0 0
        %1351 = vmatprep.subr.bf16.mxu0 0
        %1352 = vmatpush2.bf16.msra.mxu0 0
        %1353 = vmatprep.subr.bf16.mxu0 0
        %1354 = vmatpush2.bf16.msra.mxu0 0
        %1355 = vmatprep.subr.bf16.mxu0 0
        %1356 = vmatpush2.bf16.msra.mxu0 0
        %1357 = vmatprep.subr.bf16.mxu0 0
        %1358 = vmatpush2.bf16.msra.mxu0 0
        %1359 = vmatprep.subr.bf16.mxu0 0
        %1360 = vmatpush2.bf16.msra.mxu0 0
        %1361 = vmatprep.mubr.bf16.mxu0 0
        %1362 = vmatmul.mubr.bf16.gmra.mxu0 %v1264
        %v1363 = vpop.f32.mrf.mxu0
        %v1364 = vadd.f32 0.0, %v1363
        %v1365 = vpop.f32.mrf.mxu0
        %v1366 = vpop.f32.mrf.mxu0
        %v1367 = vadd.f32 0.0, %v1366
        %v1368 = vpop.f32.mrf.mxu0
        %1369 = vdwg.mxu0
        %v1370 = vadd.f32 %v857, %v1364
        %v1371 = vadd.f32 %v858, %v1367
        %v1372 = vld [vmem:[%s10 + $0x3] sm:$0x1]
        %v1373 = vld [vmem:[%s10 + $0x4] sm:$0x1]
        %1374 = vadd.xlane.f32.xlu0 %v1370
        %v1375 = vpop.xlane.xlu0 %1374
        %1376 = vadd.xlane.f32.xlu0 %v1371
        %v1377 = vpop.xlane.xlu0 %1376
        %v1378 = vrcp.pop 128.0
        %v1379 = vmul.f32 %v1375, %v1378
        %v1380 = vmul.f32 %v1377, %v1378
        %v1381 = vsub.f32 %v1370, %v1379
        %v1382 = vsub.f32 %v1371, %v1380
        %v1383 = vmul.f32 %v1381, %v1381
        %v1384 = vmul.f32 %v1382, %v1382
        %1385 = vadd.xlane.f32.xlu0 %v1383
        %v1386 = vpop.xlane.xlu0 %1385
        %1387 = vadd.xlane.f32.xlu0 %v1384
        %v1388 = vpop.xlane.xlu0 %1387
        %v1389 = vmul.f32 %v1386, %v1378
        %v1390 = vmul.f32 %v1388, %v1378
        %v1391 = vadd.f32 %v1389, 1e-12
        %v1392 = vadd.f32 %v1390, 1e-12
        %v1393 = vrsqrt.pop %v1391
        %v1394 = vrsqrt.pop %v1392
        %v1395 = vmul.f32 %v1381, %v1393
        %v1396 = vmul.f32 %v1382, %v1394
        %v1397 = vlaneseq
        %v1398 = vshrl.u32 %v1397, 7
        %v1399 = vsub.s32 0, %v1398
        %v1400 = vrot.slane %v1372, %v1399
        %v1401 = vmul.f32 %v1395, %v1400
        %v1402 = vmul.f32 %v1396, %v1400
        %v1403 = vlaneseq
        %v1404 = vshrl.u32 %v1403, 7
        %v1405 = vsub.s32 0, %v1404
        %v1406 = vrot.slane %v1373, %v1405
        %v1407 = vadd.f32 %v1401, %v1406
        %v1408 = vadd.f32 %v1402, %v1406
        %v1409 = vpack.c.bf16 %v1408, %v1407
        %v1410 = vld [vmem:[%s7] sm:$0xff]
        %v1411 = vld [vmem:[%s7 + $0x8] sm:$0xff]
        %v1412 = vld [vmem:[%s7 + $0x10] sm:$0xff]
        %v1413 = vld [vmem:[%s7 + $0x18] sm:$0xff]
        %v1414 = vld [vmem:[%s7 + $0x20] sm:$0xff]
        %v1415 = vld [vmem:[%s7 + $0x28] sm:$0xff]
        %v1416 = vld [vmem:[%s7 + $0x30] sm:$0xff]
        %v1417 = vld [vmem:[%s7 + $0x38] sm:$0xff]
        %v1418 = vld [vmem:[%s7 + $0x40] sm:$0xff]
        %v1419 = vld [vmem:[%s7 + $0x48] sm:$0xff]
        %v1420 = vld [vmem:[%s7 + $0x50] sm:$0xff]
        %v1421 = vld [vmem:[%s7 + $0x58] sm:$0xff]
        %v1422 = vld [vmem:[%s7 + $0x60] sm:$0xff]
        %v1423 = vld [vmem:[%s7 + $0x68] sm:$0xff]
        %v1424 = vld [vmem:[%s7 + $0x70] sm:$0xff]
        %v1425 = vld [vmem:[%s7 + $0x78] sm:$0xff]
        %v1426 = vld [vmem:[%s9] sm:$0x3]
        %v1428 = vlaneseq
        %v1429 = vshrl.u32 %v1428, 7
        %v1430 = vsub.s32 0, %v1429
        %v1431 = vrot.slane %v1426, %v1430
        %v1432 = vlaneseq
        %v1433 = vshrl.u32 %v1432, 7
        %v1434 = vsub.s32 1, %v1433
        %v1435 = vrot.slane %v1426, %v1434
        %v1454 = vunpack.c.l.b16 %v1410
        %v1455 = vunpack.c.h.b16 %v1410
        %v1456 = vunpack.c.l.b16 %v1411
        %v1457 = vunpack.c.h.b16 %v1411
        %v1458 = vunpack.c.l.b16 %v1412
        %v1459 = vunpack.c.h.b16 %v1412
        %v1460 = vunpack.c.l.b16 %v1413
        %v1461 = vunpack.c.h.b16 %v1413
        %v1462 = vunpack.c.l.b16 %v1414
        %v1463 = vunpack.c.h.b16 %v1414
        %v1464 = vunpack.c.l.b16 %v1415
        %v1465 = vunpack.c.h.b16 %v1415
        %v1466 = vunpack.c.l.b16 %v1416
        %v1467 = vunpack.c.h.b16 %v1416
        %v1468 = vunpack.c.l.b16 %v1417
        %v1469 = vunpack.c.h.b16 %v1417
        %v1470 = vunpack.c.l.b16 %v1418
        %v1471 = vunpack.c.h.b16 %v1418
        %v1472 = vunpack.c.l.b16 %v1419
        %v1473 = vunpack.c.h.b16 %v1419
        %v1474 = vunpack.c.l.b16 %v1420
        %v1475 = vunpack.c.h.b16 %v1420
        %v1476 = vunpack.c.l.b16 %v1421
        %v1477 = vunpack.c.h.b16 %v1421
        %v1478 = vunpack.c.l.b16 %v1422
        %v1479 = vunpack.c.h.b16 %v1422
        %v1480 = vunpack.c.l.b16 %v1423
        %v1481 = vunpack.c.h.b16 %v1423
        %v1482 = vunpack.c.l.b16 %v1424
        %v1483 = vunpack.c.h.b16 %v1424
        %v1484 = vunpack.c.l.b16 %v1425
        %v1485 = vunpack.c.h.b16 %v1425
        %v1486 = vpack.c.b16 %v1456, %v1454
        %v1487 = vpack.c.b16 %v1457, %v1455
        %v1488 = vpack.c.b16 %v1460, %v1458
        %v1489 = vpack.c.b16 %v1461, %v1459
        %v1490 = vpack.c.b16 %v1464, %v1462
        %v1491 = vpack.c.b16 %v1465, %v1463
        %v1492 = vpack.c.b16 %v1468, %v1466
        %v1493 = vpack.c.b16 %v1469, %v1467
        %v1494 = vpack.c.b16 %v1472, %v1470
        %v1495 = vpack.c.b16 %v1473, %v1471
        %v1496 = vpack.c.b16 %v1476, %v1474
        %v1497 = vpack.c.b16 %v1477, %v1475
        %v1498 = vpack.c.b16 %v1480, %v1478
        %v1499 = vpack.c.b16 %v1481, %v1479
        %v1500 = vpack.c.b16 %v1484, %v1482
        %v1501 = vpack.c.b16 %v1485, %v1483
        %1518 = vmatprep.subr.bf16.mxu0 %v1501
        %1519 = vmatpush1.bf16.msra.mxu0 %v1500
        %1520 = vmatprep.subr.bf16.mxu0 %v1499
        %1521 = vmatpush1.bf16.msra.mxu0 %v1498
        %1522 = vmatprep.subr.bf16.mxu0 %v1497
        %1523 = vmatpush1.bf16.msra.mxu0 %v1496
        %1524 = vmatprep.subr.bf16.mxu0 %v1495
        %1525 = vmatpush1.bf16.msra.mxu0 %v1494
        %1526 = vmatprep.subr.bf16.mxu0 %v1493
        %1527 = vmatpush1.bf16.msra.mxu0 %v1492
        %1528 = vmatprep.subr.bf16.mxu0 %v1491
        %1529 = vmatpush1.bf16.msra.mxu0 %v1490
        %1530 = vmatprep.subr.bf16.mxu0 %v1489
        %1531 = vmatpush1.bf16.msra.mxu0 %v1488
        %1532 = vmatprep.subr.bf16.mxu0 %v1487
        %1533 = vmatpush1.bf16.msra.mxu0 %v1486
        %1534 = vmatprep.subr.bf16.mxu0 0
        %1535 = vmatpush2.bf16.msra.mxu0 0
        %1536 = vmatprep.subr.bf16.mxu0 0
        %1537 = vmatpush2.bf16.msra.mxu0 0
        %1538 = vmatprep.subr.bf16.mxu0 0
        %1539 = vmatpush2.bf16.msra.mxu0 0
        %1540 = vmatprep.subr.bf16.mxu0 0
        %1541 = vmatpush2.bf16.msra.mxu0 0
        %1542 = vmatprep.subr.bf16.mxu0 0
        %1543 = vmatpush2.bf16.msra.mxu0 0
        %1544 = vmatprep.subr.bf16.mxu0 0
        %1545 = vmatpush2.bf16.msra.mxu0 0
        %1546 = vmatprep.subr.bf16.mxu0 0
        %1547 = vmatpush2.bf16.msra.mxu0 0
        %1548 = vmatprep.subr.bf16.mxu0 0
        %1549 = vmatpush2.bf16.msra.mxu0 0
        %1550 = vmatprep.mubr.bf16.mxu0 0
        %1551 = vmatmul.mubr.bf16.gmra.mxu0 %v1409
        %v1552 = vpop.f32.mrf.mxu0
        %v1553 = vadd.f32 %v1431, %v1552
        %v1554 = vpop.f32.mrf.mxu0
        %v1555 = vadd.f32 %v1435, %v1554
        %v1556 = vpop.f32.mrf.mxu0
        %v1557 = vadd.f32 %v1431, %v1556
        %v1558 = vpop.f32.mrf.mxu0
        %v1559 = vadd.f32 %v1435, %v1558
        %1560 = vdwg.mxu0
        %v1561 = vmax.f32 %v1553, 0.0
        %v1562 = vmax.f32 %v1555, 0.0
        %v1563 = vmax.f32 %v1557, 0.0
        %v1564 = vmax.f32 %v1559, 0.0
        %v1565 = vpack.c.bf16 %v1563, %v1561
        %v1566 = vpack.c.bf16 %v1564, %v1562
        %v1567 = vld [vmem:[%s8] sm:$0xf]
        %v1568 = vld [vmem:[%s8 + $0x4] sm:$0xf]
        %v1569 = vld [vmem:[%s8 + $0x8] sm:$0xf]
        %v1570 = vld [vmem:[%s8 + $0xc] sm:$0xf]
        %v1571 = vld [vmem:[%s8 + $0x10] sm:$0xf]
        %v1572 = vld [vmem:[%s8 + $0x14] sm:$0xf]
        %v1573 = vld [vmem:[%s8 + $0x18] sm:$0xf]
        %v1574 = vld [vmem:[%s8 + $0x1c] sm:$0xf]
        %v1575 = vld [vmem:[%s8 + $0x20] sm:$0xf]
        %v1576 = vld [vmem:[%s8 + $0x24] sm:$0xf]
        %v1577 = vld [vmem:[%s8 + $0x28] sm:$0xf]
        %v1578 = vld [vmem:[%s8 + $0x2c] sm:$0xf]
        %v1579 = vld [vmem:[%s8 + $0x30] sm:$0xf]
        %v1580 = vld [vmem:[%s8 + $0x34] sm:$0xf]
        %v1581 = vld [vmem:[%s8 + $0x38] sm:$0xf]
        %v1582 = vld [vmem:[%s8 + $0x3c] sm:$0xf]
        %v1583 = vld [vmem:[%s8 + $0x40] sm:$0xf]
        %v1584 = vld [vmem:[%s8 + $0x44] sm:$0xf]
        %v1585 = vld [vmem:[%s8 + $0x48] sm:$0xf]
        %v1586 = vld [vmem:[%s8 + $0x4c] sm:$0xf]
        %v1587 = vld [vmem:[%s8 + $0x50] sm:$0xf]
        %v1588 = vld [vmem:[%s8 + $0x54] sm:$0xf]
        %v1589 = vld [vmem:[%s8 + $0x58] sm:$0xf]
        %v1590 = vld [vmem:[%s8 + $0x5c] sm:$0xf]
        %v1591 = vld [vmem:[%s8 + $0x60] sm:$0xf]
        %v1592 = vld [vmem:[%s8 + $0x64] sm:$0xf]
        %v1593 = vld [vmem:[%s8 + $0x68] sm:$0xf]
        %v1594 = vld [vmem:[%s8 + $0x6c] sm:$0xf]
        %v1595 = vld [vmem:[%s8 + $0x70] sm:$0xf]
        %v1596 = vld [vmem:[%s8 + $0x74] sm:$0xf]
        %v1597 = vld [vmem:[%s8 + $0x78] sm:$0xf]
        %v1598 = vld [vmem:[%s8 + $0x7c] sm:$0xf]
        %v1599 = vld [vmem:[%s10 + $0x2] sm:$0x1]
        %v1600 = vlaneseq
        %v1601 = vshrl.u32 %v1600, 7
        %v1602 = vsub.s32 0, %v1601
        %v1603 = vrot.slane %v1599, %v1602
        %v1636 = vunpack.c.l.b16 %v1567
        %v1637 = vunpack.c.l.b16 %v1568
        %v1638 = vunpack.c.l.b16 %v1569
        %v1639 = vunpack.c.l.b16 %v1570
        %v1640 = vunpack.c.l.b16 %v1571
        %v1641 = vunpack.c.l.b16 %v1572
        %v1642 = vunpack.c.l.b16 %v1573
        %v1643 = vunpack.c.l.b16 %v1574
        %v1644 = vunpack.c.l.b16 %v1575
        %v1645 = vunpack.c.l.b16 %v1576
        %v1646 = vunpack.c.l.b16 %v1577
        %v1647 = vunpack.c.l.b16 %v1578
        %v1648 = vunpack.c.l.b16 %v1579
        %v1649 = vunpack.c.l.b16 %v1580
        %v1650 = vunpack.c.l.b16 %v1581
        %v1651 = vunpack.c.l.b16 %v1582
        %v1652 = vunpack.c.l.b16 %v1583
        %v1653 = vunpack.c.l.b16 %v1584
        %v1654 = vunpack.c.l.b16 %v1585
        %v1655 = vunpack.c.l.b16 %v1586
        %v1656 = vunpack.c.l.b16 %v1587
        %v1657 = vunpack.c.l.b16 %v1588
        %v1658 = vunpack.c.l.b16 %v1589
        %v1659 = vunpack.c.l.b16 %v1590
        %v1660 = vunpack.c.l.b16 %v1591
        %v1661 = vunpack.c.l.b16 %v1592
        %v1662 = vunpack.c.l.b16 %v1593
        %v1663 = vunpack.c.l.b16 %v1594
        %v1664 = vunpack.c.l.b16 %v1595
        %v1665 = vunpack.c.l.b16 %v1596
        %v1666 = vunpack.c.l.b16 %v1597
        %v1667 = vunpack.c.l.b16 %v1598
        %v1668 = vpack.c.b16 %v1637, %v1636
        %v1669 = vpack.c.b16 %v1639, %v1638
        %v1670 = vpack.c.b16 %v1641, %v1640
        %v1671 = vpack.c.b16 %v1643, %v1642
        %v1672 = vpack.c.b16 %v1645, %v1644
        %v1673 = vpack.c.b16 %v1647, %v1646
        %v1674 = vpack.c.b16 %v1649, %v1648
        %v1675 = vpack.c.b16 %v1651, %v1650
        %v1676 = vpack.c.b16 %v1653, %v1652
        %v1677 = vpack.c.b16 %v1655, %v1654
        %v1678 = vpack.c.b16 %v1657, %v1656
        %v1679 = vpack.c.b16 %v1659, %v1658
        %v1680 = vpack.c.b16 %v1661, %v1660
        %v1681 = vpack.c.b16 %v1663, %v1662
        %v1682 = vpack.c.b16 %v1665, %v1664
        %v1683 = vpack.c.b16 %v1667, %v1666
        %1700 = vmatprep.subr.bf16.mxu0 0
        %1701 = vmatpush1.bf16.msra.mxu0 %v1675
        %1702 = vmatprep.subr.bf16.mxu0 0
        %1703 = vmatpush1.bf16.msra.mxu0 %v1674
        %1704 = vmatprep.subr.bf16.mxu0 0
        %1705 = vmatpush1.bf16.msra.mxu0 %v1673
        %1706 = vmatprep.subr.bf16.mxu0 0
        %1707 = vmatpush1.bf16.msra.mxu0 %v1672
        %1708 = vmatprep.subr.bf16.mxu0 0
        %1709 = vmatpush1.bf16.msra.mxu0 %v1671
        %1710 = vmatprep.subr.bf16.mxu0 0
        %1711 = vmatpush1.bf16.msra.mxu0 %v1670
        %1712 = vmatprep.subr.bf16.mxu0 0
        %1713 = vmatpush1.bf16.msra.mxu0 %v1669
        %1714 = vmatprep.subr.bf16.mxu0 0
        %1715 = vmatpush1.bf16.msra.mxu0 %v1668
        %1716 = vmatprep.subr.bf16.mxu0 0
        %1717 = vmatpush2.bf16.msra.mxu0 %v1683
        %1718 = vmatprep.subr.bf16.mxu0 0
        %1719 = vmatpush2.bf16.msra.mxu0 %v1682
        %1720 = vmatprep.subr.bf16.mxu0 0
        %1721 = vmatpush2.bf16.msra.mxu0 %v1681
        %1722 = vmatprep.subr.bf16.mxu0 0
        %1723 = vmatpush2.bf16.msra.mxu0 %v1680
        %1724 = vmatprep.subr.bf16.mxu0 0
        %1725 = vmatpush2.bf16.msra.mxu0 %v1679
        %1726 = vmatprep.subr.bf16.mxu0 0
        %1727 = vmatpush2.bf16.msra.mxu0 %v1678
        %1728 = vmatprep.subr.bf16.mxu0 0
        %1729 = vmatpush2.bf16.msra.mxu0 %v1677
        %1730 = vmatprep.subr.bf16.mxu0 0
        %1731 = vmatpush2.bf16.msra.mxu0 %v1676
        %1732 = vmatprep.mubr.bf16.mxu0 %v1566
        %1733 = vmatmul.mubr.bf16.gmra.mxu0 %v1565
        %v1734 = vpop.f32.mrf.mxu0
        %v1735 = vadd.f32 %v1603, %v1734
        %v1736 = vpop.f32.mrf.mxu0
        %v1737 = vpop.f32.mrf.mxu0
        %v1738 = vadd.f32 %v1603, %v1737
        %v1739 = vpop.f32.mrf.mxu0
        %1740 = vdwg.mxu0
        %v1741 = vadd.f32 %v1407, %v1735
        %v1742 = vadd.f32 %v1408, %v1738
        %v1743 = vld [vmem:[%s10 + $0x5] sm:$0x1]
        %v1744 = vld [vmem:[%s10 + $0x6] sm:$0x1]
        %1745 = vadd.xlane.f32.xlu0 %v1741
        %v1746 = vpop.xlane.xlu0 %1745
        %1747 = vadd.xlane.f32.xlu0 %v1742
        %v1748 = vpop.xlane.xlu0 %1747
        %v1749 = vmul.f32 %v1746, %v1378
        %v1750 = vmul.f32 %v1748, %v1378
        %v1751 = vsub.f32 %v1741, %v1749
        %v1752 = vsub.f32 %v1742, %v1750
        %v1753 = vmul.f32 %v1751, %v1751
        %v1754 = vmul.f32 %v1752, %v1752
        %1755 = vadd.xlane.f32.xlu0 %v1753
        %v1756 = vpop.xlane.xlu0 %1755
        %1757 = vadd.xlane.f32.xlu0 %v1754
        %v1758 = vpop.xlane.xlu0 %1757
        %v1759 = vmul.f32 %v1756, %v1378
        %v1760 = vmul.f32 %v1758, %v1378
        %v1761 = vadd.f32 %v1759, 1e-12
        %v1762 = vadd.f32 %v1760, 1e-12
        %v1763 = vrsqrt.pop %v1761
        %v1764 = vrsqrt.pop %v1762
        %v1765 = vmul.f32 %v1751, %v1763
        %v1766 = vmul.f32 %v1752, %v1764
        %v1767 = vlaneseq
        %v1768 = vshrl.u32 %v1767, 7
        %v1769 = vsub.s32 0, %v1768
        %v1770 = vrot.slane %v1743, %v1769
        %v1771 = vmul.f32 %v1765, %v1770
        %v1772 = vmul.f32 %v1766, %v1770
        %v1773 = vlaneseq
        %v1774 = vshrl.u32 %v1773, 7
        %v1775 = vsub.s32 0, %v1774
        %v1776 = vrot.slane %v1744, %v1775
        %v1777 = vadd.f32 %v1771, %v1776
        %v1778 = vadd.f32 %v1772, %v1776
        %1779 = vst [vmem:[#allocation3] sm:$0xff] %v1777
        %1780 = vst [vmem:[#allocation3 + $0x8] sm:$0xff] %v1778
        %s1781 = smul.u32 %s31, 128
        %s1782 = sld [smem:[#allocation5 + %s1781]]
        %s1783 = scalar_lea.vmem [#allocation3], %s1782
        %v1784 = vld [vmem:[%s1783] sm:$0x1]
        %s1785 = sadd.s32 %s1781, 1
        %s1786 = sld [smem:[#allocation5 + %s1785]]
        %s1787 = scalar_lea.vmem [#allocation3], %s1786
        %v1788 = vld [vmem:[%s1787] sm:$0x1]
        %v1790 = vrot.slane %v1788, 7
        %vm1792 = vcmask 1040384
        %v1793 = vsel %vm1792, %v1784, %v1790
        %v1794 = vpack.c.bf16 %v1793, %v1793
        %v1795 = vld [vmem:[%s12] sm:$0xf]
        %v1796 = vld [vmem:[%s12 + $0x4] sm:$0xf]
        %v1797 = vld [vmem:[%s12 + $0x8] sm:$0xf]
        %v1798 = vld [vmem:[%s12 + $0xc] sm:$0xf]
        %v1799 = vld [vmem:[%s12 + $0x10] sm:$0xf]
        %v1800 = vld [vmem:[%s12 + $0x14] sm:$0xf]
        %v1801 = vld [vmem:[%s12 + $0x18] sm:$0xf]
        %v1802 = vld [vmem:[%s12 + $0x1c] sm:$0xf]
        %v1803 = vld [vmem:[%s12 + $0x20] sm:$0xf]
        %v1804 = vld [vmem:[%s12 + $0x24] sm:$0xf]
        %v1805 = vld [vmem:[%s12 + $0x28] sm:$0xf]
        %v1806 = vld [vmem:[%s12 + $0x2c] sm:$0xf]
        %v1807 = vld [vmem:[%s12 + $0x30] sm:$0xf]
        %v1808 = vld [vmem:[%s12 + $0x34] sm:$0xf]
        %v1809 = vld [vmem:[%s12 + $0x38] sm:$0xf]
        %v1810 = vld [vmem:[%s12 + $0x3c] sm:$0xf]
        %v1827 = vunpack.c.l.b16 %v1795
        %v1828 = vunpack.c.l.b16 %v1796
        %v1829 = vunpack.c.l.b16 %v1797
        %v1830 = vunpack.c.l.b16 %v1798
        %v1831 = vunpack.c.l.b16 %v1799
        %v1832 = vunpack.c.l.b16 %v1800
        %v1833 = vunpack.c.l.b16 %v1801
        %v1834 = vunpack.c.l.b16 %v1802
        %v1835 = vunpack.c.l.b16 %v1803
        %v1836 = vunpack.c.l.b16 %v1804
        %v1837 = vunpack.c.l.b16 %v1805
        %v1838 = vunpack.c.l.b16 %v1806
        %v1839 = vunpack.c.l.b16 %v1807
        %v1840 = vunpack.c.l.b16 %v1808
        %v1841 = vunpack.c.l.b16 %v1809
        %v1842 = vunpack.c.l.b16 %v1810
        %v1843 = vpack.c.b16 %v1828, %v1827
        %v1844 = vpack.c.b16 %v1830, %v1829
        %v1845 = vpack.c.b16 %v1832, %v1831
        %v1846 = vpack.c.b16 %v1834, %v1833
        %v1847 = vpack.c.b16 %v1836, %v1835
        %v1848 = vpack.c.b16 %v1838, %v1837
        %v1849 = vpack.c.b16 %v1840, %v1839
        %v1850 = vpack.c.b16 %v1842, %v1841
        %1859 = vmatprep.subr.bf16.mxu0 0
        %1860 = vmatpush1.bf16.msra.mxu0 %v1850
        %1861 = vmatprep.subr.bf16.mxu0 0
        %1862 = vmatpush1.bf16.msra.mxu0 %v1849
        %1863 = vmatprep.subr.bf16.mxu0 0
        %1864 = vmatpush1.bf16.msra.mxu0 %v1848
        %1865 = vmatprep.subr.bf16.mxu0 0
        %1866 = vmatpush1.bf16.msra.mxu0 %v1847
        %1867 = vmatprep.subr.bf16.mxu0 0
        %1868 = vmatpush1.bf16.msra.mxu0 %v1846
        %1869 = vmatprep.subr.bf16.mxu0 0
        %1870 = vmatpush1.bf16.msra.mxu0 %v1845
        %1871 = vmatprep.subr.bf16.mxu0 0
        %1872 = vmatpush1.bf16.msra.mxu0 %v1844
        %1873 = vmatprep.subr.bf16.mxu0 0
        %1874 = vmatpush1.bf16.msra.mxu0 %v1843
        %1875 = vmatprep.subr.bf16.mxu0 0
        %1876 = vmatpush2.bf16.msra.mxu0 0
        %1877 = vmatprep.subr.bf16.mxu0 0
        %1878 = vmatpush2.bf16.msra.mxu0 0
        %1879 = vmatprep.subr.bf16.mxu0 0
        %1880 = vmatpush2.bf16.msra.mxu0 0
        %1881 = vmatprep.subr.bf16.mxu0 0
        %1882 = vmatpush2.bf16.msra.mxu0 0
        %1883 = vmatprep.subr.bf16.mxu0 0
        %1884 = vmatpush2.bf16.msra.mxu0 0
        %1885 = vmatprep.subr.bf16.mxu0 0
        %1886 = vmatpush2.bf16.msra.mxu0 0
        %1887 = vmatprep.subr.bf16.mxu0 0
        %1888 = vmatpush2.bf16.msra.mxu0 0
        %1889 = vmatprep.subr.bf16.mxu0 0
        %1890 = vmatpush2.bf16.msra.mxu0 0
        %1891 = vmatprep.mubr.bf16.mxu0 0
        %1892 = vmatmul.mubr.bf16.gmra.mxu0 %v1794
        %v1893 = vpop.f32.mrf.mxu0
        %v1894 = vadd.f32 0.0, %v1893
        %v1895 = vpop.f32.mrf.mxu0
        %v1896 = vpop.f32.mrf.mxu0
        %v1897 = vpop.f32.mrf.mxu0
        %1898 = vdwg.mxu0
        %1900 = vrot.lane.b32.xlu0 %v1894, 120
        %v1901 = vpop.permute.xlu0 %1900
        %v1903 = vsel %vm1792, %v1894, %v1901
        %vm1904 = vcmask 58368
        %1905 = vst.msk [vmem:[%s453] sm:$0x3] %vm1904, %v1903
        %p1906 = scmp.lt.s32.totalorder %s31, 1
        %s1907 = scalar_select %p1906, %s31, 1
        %s1908 = smul.addr %s1907, 2
        %s1909 = scalar_lea.vmem %s13, %s1908
        // Predicated region
        $region73: #{forward.1} parent=67 // pred_check
          %p1910 = pneg %p311
        $region74: #{forward.1} parent=67 // pred_check_branch
          %1912 = sbr.rel (%p1910) target = $region76
        $region75: #{forward.1} parent=67 // pred_region
          _
        $region76: #{forward.1} parent=67 // pred_fallthru
          _
      $region68: #{forward.1} parent=5 // pred_fallthru
        _
      %p1913 = scmp.le.s32.totalorder 2, %s26
      // Predicated region
      $region77: #{forward.1} parent=5 // pred_check
        %p1914 = pneg %p1913
      $region78: #{forward.1} parent=5 // pred_check_branch
        %1916 = sbr.rel (%p1914) target = $region80
      $region79: #{forward.1} parent=5 // pred_region
        %s1917 = ssub.s32 %s26, 2
        // Predicated region
        $region81: #{forward.1} parent=79 // pred_check
          %p1918 = pneg %p317
        $region82: #{forward.1} parent=79 // pred_check_branch
          %1920 = sbr.rel (%p1918) target = $region84
        $region83: #{forward.1} parent=79 // pred_region
          %p1921 = scmp.lt.s32.totalorder %s32, 1
          %s1922 = scalar_select %p1921, %s32, 1
          %s1923 = smul.addr %s1922, 2
          %s1924 = scalar_lea.vmem %s13, %s1923
        $region84: #{forward.1} parent=79 // pred_fallthru
          _
      $region80: #{forward.1} parent=5 // pred_fallthru
        _
    $region6: #{forward.1} parent=1 // loop_footer
      %s30 = sadd.s32 1, %s26
    $region7: #{forward.1} parent=1 // loop_footer_branch
      %25 = sbr.rel target = $region3
    $region8: #{forward.1} parent=1 // loop_exit
      _
    %1925 = vsyncpa [#allocation7], 1
    %s1926 = scalar_lea.sflag [#allocation7], 1
    %1927 = vsyncpa %s1926, 1

</llo_original>
